<compile_context>
chip_gen: v5e
topology: v5e:2x2
jax: 0.10.0
libtpu: 0.0.40
codegen_flags: <defaults>
</compile_context>

<pallas_src>
import functools

import jax
import jax.numpy as jnp
from jax import lax
from jax.experimental import pallas as pl
from jax.experimental.pallas import tpu as pltpu

EMBED_DIM = 512
PATCH_DIM = 384
REGION_DIM = 768
_EPS_SQ = 1e-24  # (F.normalize eps=1e-12)^2, applied to the sum of squares


def _round_up(x, m):
    return (x + m - 1) // m * m


def _choose_tile(B, tile_b):
    if B <= 64:
        # Single (possibly partial) block for tiny batches.
        return _round_up(max(B, 1), 8)
    # Ensure at least two grid steps so the "parallel" axis can shard across
    # v7x's two TensorCores (harmless on single-TC v5e/v6e).
    return max(8, min(tile_b, _round_up(pl.cdiv(B, 2), 8)))


def _l2_normalize_f32(x_f32):
    # F.normalize(x, dim=-1): x / max(||x||, eps)  ==  x * rsqrt(max(sumsq, eps^2))
    # rsqrt lowers to the EUP slot (co-issues with MXU/VALU work).
    sumsq = jnp.sum(x_f32 * x_f32, axis=-1, keepdims=True)
    return x_f32 * lax.rsqrt(jnp.maximum(sumsq, _EPS_SQ))


def _ssl_kernel(patch_ref, region_ref, wp_ref, bp_ref, wr_ref, br_ref, out_ref,
                *, normalize_ssl: bool, compute_dtype):
    if normalize_ssl:
        patch = _l2_normalize_f32(patch_ref[...].astype(jnp.float32)).astype(compute_dtype)
        region = _l2_normalize_f32(region_ref[...].astype(jnp.float32)).astype(compute_dtype)
    else:
        patch = patch_ref[...].astype(compute_dtype)
        region = region_ref[...].astype(compute_dtype)

    # Two MXU matmuls, f32 accumulation, f32 bias add.
    patch_proj = jnp.dot(patch, wp_ref[...],
                         preferred_element_type=jnp.float32) + bp_ref[...]
    region_proj = jnp.dot(region, wr_ref[...],
                          preferred_element_type=jnp.float32) + br_ref[...]

    # Lane-dense stores (both halves are 512-wide, multiple of 128 lanes).
    out_ref[:, :EMBED_DIM] = patch_proj.astype(out_ref.dtype)
    out_ref[:, EMBED_DIM:] = region_proj.astype(out_ref.dtype)


def _ssl_kernel_no_region(patch_ref, wp_ref, bp_ref, br_ref, out_ref,
                          *, normalize_ssl: bool, compute_dtype):
    # Region missing: PyTorch uses zeros -> projection is bias only
    # (F.normalize(zeros) is also zeros, so this holds with normalize_ssl too).
    if normalize_ssl:
        patch = _l2_normalize_f32(patch_ref[...].astype(jnp.float32)).astype(compute_dtype)
    else:
        patch = patch_ref[...].astype(compute_dtype)

    patch_proj = jnp.dot(patch, wp_ref[...],
                         preferred_element_type=jnp.float32) + bp_ref[...]

    out_ref[:, :EMBED_DIM] = patch_proj.astype(out_ref.dtype)
    out_ref[:, EMBED_DIM:] = jnp.broadcast_to(
        br_ref[...], (out_ref.shape[0], EMBED_DIM)).astype(out_ref.dtype)


def prepare_ssl_params(wp, bp, wr, br, compute_dtype=jnp.bfloat16):
    """One-time parameter prep (hoisted out of the per-call path).

    wp: (384, 512) transposed patch_fc weight; bp: (512,)
    wr: (768, 512) transposed region_fc weight; br: (512,)
    Weights are stored in the compute dtype; biases stay f32 and are added to
    the f32 MXU accumulator.
    """
    return {
        "wp": wp.astype(compute_dtype),
        "bp": bp.reshape(1, EMBED_DIM).astype(jnp.float32),
        "wr": wr.astype(compute_dtype),
        "br": br.reshape(1, EMBED_DIM).astype(jnp.float32),
    }


def ssl_embedder(patch_embed, region_embed, params, *,
                 normalize_ssl: bool = False,
                 activation_dtype=None,
                 out_dtype=None,
                 tile_b: int = 1024):
    """JAX wrapper mirroring SSLEmbedder.forward.

    patch_embed : (B, 384)
    region_embed: (B, 768) or None (missing-key branch of the PyTorch module)
    params      : dict from prepare_ssl_params()
    returns     : (B, 2, 512) in out_dtype (default: params' compute dtype)
    """
    B = patch_embed.shape[0]
    compute_dtype = params["wp"].dtype
    if out_dtype is None:
        out_dtype = compute_dtype
    if activation_dtype is None:
        # Keep original (f32) activations for the normalize path so the L2 norm
        # matches PyTorch's f32 F.normalize; otherwise stream bf16 (half bytes).
        activation_dtype = patch_embed.dtype if normalize_ssl else compute_dtype

    tb = _choose_tile(B, tile_b)
    grid = (pl.cdiv(B, tb),)

    wp_c, bp2 = params["wp"], params["bp"]
    wr_c, br2 = params["wr"], params["br"]

    kernel_kwargs = dict(normalize_ssl=normalize_ssl, compute_dtype=compute_dtype)
    cparams = pltpu.CompilerParams(
        dimension_semantics=("parallel",),          # megacore sharding on v7x
        vmem_limit_bytes=32 * 1024 * 1024,          # safe on v5e/v6e/v7x
    )

    out_shape = jax.ShapeDtypeStruct((B, 2 * EMBED_DIM), out_dtype)
    out_spec = pl.BlockSpec((tb, 2 * EMBED_DIM), lambda i: (i, 0))
    patch_spec = pl.BlockSpec((tb, PATCH_DIM), lambda i: (i, 0))
    region_spec = pl.BlockSpec((tb, REGION_DIM), lambda i: (i, 0))
    wp_spec = pl.BlockSpec((PATCH_DIM, EMBED_DIM), lambda i: (0, 0))
    wr_spec = pl.BlockSpec((REGION_DIM, EMBED_DIM), lambda i: (0, 0))
    b_spec = pl.BlockSpec((1, EMBED_DIM), lambda i: (0, 0))

    patch_act = patch_embed.astype(activation_dtype)

    if region_embed is None:
        out = pl.pallas_call(
            functools.partial(_ssl_kernel_no_region, **kernel_kwargs),
            out_shape=out_shape,
            grid=grid,
            in_specs=[patch_spec, wp_spec, b_spec, b_spec],
            out_specs=out_spec,
            compiler_params=cparams,
        )(patch_act, wp_c, bp2, br2)
    else:
        region_act = region_embed.astype(activation_dtype)
        out = pl.pallas_call(
            functools.partial(_ssl_kernel, **kernel_kwargs),
            out_shape=out_shape,
            grid=grid,
            in_specs=[patch_spec, region_spec, wp_spec, b_spec, wr_spec, b_spec],
            out_specs=out_spec,
            compiler_params=cparams,
        )(patch_act, region_act, wp_c, bp2, wr_c, br2)

    # Free contiguous reshape: [:, :512] -> index 0 of dim 1, [:, 512:] -> index 1,
    # exactly torch.stack([patch_proj, region_proj], dim=1).
    return out.reshape(B, 2, EMBED_DIM)


def _init_linear(key, in_dim, out_dim):
    """Deterministic nn.Linear-style init: U(-1/sqrt(in), 1/sqrt(in))."""
    kw, kb = jax.random.split(key)
    bound = 1.0 / jnp.sqrt(jnp.float32(in_dim))
    # Stored already transposed: (in_dim, out_dim) so kernel does x @ W.
    w = jax.random.uniform(kw, (in_dim, out_dim), jnp.float32, -bound, bound)
    b = jax.random.uniform(kb, (out_dim,), jnp.float32, -bound, bound)
    return w, b


if __name__ == "__main__":
    key = jax.random.PRNGKey(0)
    k_patch, k_region, k_wp, k_wr = jax.random.split(key, 4)

    B = 2
    patch_embed = jax.random.normal(k_patch, (B, PATCH_DIM), jnp.float32)
    region_embed = jax.random.normal(k_region, (B, REGION_DIM), jnp.float32)

    wp, bp = _init_linear(k_wp, PATCH_DIM, EMBED_DIM)
    wr, br = _init_linear(k_wr, REGION_DIM, EMBED_DIM)

    # One-time parameter prep (cast/reshape hoisted out of the per-call path).
    params_f32 = prepare_ssl_params(wp, bp, wr, br, compute_dtype=jnp.float32)
    params_bf16 = prepare_ssl_params(wp, bp, wr, br, compute_dtype=jnp.bfloat16)

    # Pure-JAX f32 reference.
    ref = jnp.stack([patch_embed @ wp + bp, region_embed @ wr + br], axis=1)

    # 1) f32 compute path: tight check of kernel logic / layout.
    out_f32 = jax.block_until_ready(
        ssl_embedder(patch_embed, region_embed, params_f32))
    assert out_f32.shape == (B, 2, EMBED_DIM), out_f32.shape
    assert out_f32.dtype == jnp.float32
    assert jnp.allclose(out_f32, ref, atol=1e-4, rtol=1e-4), "f32 path mismatch"

    # 2) default bf16 path (bf16 activation streams, bf16 output): loose tolerance.
    out_bf16 = jax.block_until_ready(
        ssl_embedder(patch_embed, region_embed, params_bf16))
    assert out_bf16.shape == (B, 2, EMBED_DIM)
    assert out_bf16.dtype == jnp.bfloat16
    assert jnp.allclose(out_bf16.astype(jnp.float32), ref,
                        atol=5e-2, rtol=5e-2), "bf16 path mismatch"

    # 3) normalize_ssl path (f32 compute + f32 activations, tight tolerance).
    def l2n(x):
        return x / jnp.maximum(jnp.linalg.norm(x, axis=-1, keepdims=True), 1e-12)

    ref_n = jnp.stack([l2n(patch_embed) @ wp + bp,
                       l2n(region_embed) @ wr + br], axis=1)
    out_n = jax.block_until_ready(
        ssl_embedder(patch_embed, region_embed, params_f32, normalize_ssl=True))
    assert jnp.allclose(out_n, ref_n, atol=1e-4, rtol=1e-4), "normalize path mismatch"

    # 4) missing-region branch: region half is bias-only, patch half unchanged.
    out_missing = jax.block_until_ready(
        ssl_embedder(patch_embed, None, params_bf16))
    assert jnp.allclose(out_missing[:, 1, :].astype(jnp.float32),
                        jnp.broadcast_to(br, (B, EMBED_DIM)),
                        atol=1e-2), "zeros-region branch mismatch (bias half)"
    assert jnp.allclose(out_missing[:, 0, :].astype(jnp.float32), ref[:, 0, :],
                        atol=5e-2, rtol=5e-2), "zeros-region branch mismatch (patch half)"

    # 5) B not a multiple of 8 -> partial last block is masked by Pallas (no padding
    #    passes in the wrapper anymore); f32 compute for a tight check.
    B2 = 10
    pe2 = jax.random.normal(jax.random.PRNGKey(1), (B2, PATCH_DIM), jnp.float32)
    re2 = jax.random.normal(jax.random.PRNGKey(2), (B2, REGION_DIM), jnp.float32)
    ref2 = jnp.stack([pe2 @ wp + bp, re2 @ wr + br], axis=1)
    out2 = jax.block_until_ready(ssl_embedder(pe2, re2, params_f32))
    assert out2.shape == (B2, 2, EMBED_DIM)
    assert jnp.allclose(out2, ref2, atol=1e-4, rtol=1e-4), "partial-block mismatch"

    print("KERNEL_OK")
</pallas_src>

<mosaic_0001>
module attributes {stable_mosaic.version = 11 : i64} {
  func.func @_ssl_kernel(%arg0: i32, %arg1: memref<8x384xf32, #tpu.memory_space<vmem>>, %arg2: memref<8x768xf32, #tpu.memory_space<vmem>>, %arg3: memref<384x512xf32, #tpu.memory_space<vmem>>, %arg4: memref<1x512xf32, #tpu.memory_space<vmem>>, %arg5: memref<768x512xf32, #tpu.memory_space<vmem>>, %arg6: memref<1x512xf32, #tpu.memory_space<vmem>>, %arg7: memref<8x1024xf32, #tpu.memory_space<vmem>>) attributes {dimension_semantics = [#tpu.dimension_semantics<parallel>], iteration_bounds = array<i64: 1>, scalar_prefetch = 0 : i64, scratch_operands = 0 : i64, tpu.core_type = #tpu.core_type<tc>, window_params = [{transform_indices = @transform_0, window_bounds = array<i64: 8, 384>}, {transform_indices = @transform_1, window_bounds = array<i64: 8, 768>}, {pipeline_mode = #tpu.pipeline_mode<synchronous>, transform_indices = @transform_2, window_bounds = array<i64: 384, 512>}, {pipeline_mode = #tpu.pipeline_mode<synchronous>, transform_indices = @transform_3, window_bounds = array<i64: 1, 512>}, {pipeline_mode = #tpu.pipeline_mode<synchronous>, transform_indices = @transform_4, window_bounds = array<i64: 768, 512>}, {pipeline_mode = #tpu.pipeline_mode<synchronous>, transform_indices = @transform_5, window_bounds = array<i64: 1, 512>}, {transform_indices = @transform_6, window_bounds = array<i64: 8, 1024>}]} {
    %c0 = arith.constant 0 : index
    %c0_0 = arith.constant 0 : index
    %0 = vector.load %arg1[%c0, %c0_0] : memref<8x384xf32, #tpu.memory_space<vmem>>, vector<8x384xf32>
    %c0_1 = arith.constant 0 : index
    %c0_2 = arith.constant 0 : index
    %1 = vector.load %arg2[%c0_1, %c0_2] : memref<8x768xf32, #tpu.memory_space<vmem>>, vector<8x768xf32>
    %c0_3 = arith.constant 0 : index
    %c0_4 = arith.constant 0 : index
    %2 = vector.load %arg3[%c0_3, %c0_4] : memref<384x512xf32, #tpu.memory_space<vmem>>, vector<384x512xf32>
    %cst = arith.constant dense<0.000000e+00> : vector<8x512xf32>
    %3 = tpu.matmul %0, %2, %cst {dimension_numbers = #tpu.dot_dimension_numbers<[1], [0], [0], [1], [0, 0, 1, 1], [], []>} : vector<8x384xf32>, vector<384x512xf32>, vector<8x512xf32> -> vector<8x512xf32>
    %c0_5 = arith.constant 0 : index
    %c0_6 = arith.constant 0 : index
    %4 = vector.load %arg4[%c0_5, %c0_6] : memref<1x512xf32, #tpu.memory_space<vmem>>, vector<1x512xf32>
    %5 = vector.broadcast %4 : vector<1x512xf32> to vector<8x512xf32>
    %6 = arith.addf %3, %5 : vector<8x512xf32>
    %c0_7 = arith.constant 0 : index
    %c0_8 = arith.constant 0 : index
    %7 = vector.load %arg5[%c0_7, %c0_8] : memref<768x512xf32, #tpu.memory_space<vmem>>, vector<768x512xf32>
    %cst_9 = arith.constant dense<0.000000e+00> : vector<8x512xf32>
    %8 = tpu.matmul %1, %7, %cst_9 {dimension_numbers = #tpu.dot_dimension_numbers<[1], [0], [0], [1], [0, 0, 1, 1], [], []>} : vector<8x768xf32>, vector<768x512xf32>, vector<8x512xf32> -> vector<8x512xf32>
    %c0_10 = arith.constant 0 : index
    %c0_11 = arith.constant 0 : index
    %9 = vector.load %arg6[%c0_10, %c0_11] : memref<1x512xf32, #tpu.memory_space<vmem>>, vector<1x512xf32>
    %10 = vector.broadcast %9 : vector<1x512xf32> to vector<8x512xf32>
    %11 = arith.addf %8, %10 : vector<8x512xf32>
    %c0_12 = arith.constant 0 : index
    %c0_13 = arith.constant 0 : index
    %12 = vector.load %arg7[%c0_12, %c0_13] : memref<8x1024xf32, #tpu.memory_space<vmem>>, vector<8x512xf32>
    tpu.vector_store %arg7[%c0_12, %c0_13], %6 {strides = array<i32>} : memref<8x1024xf32, #tpu.memory_space<vmem>>, vector<8x512xf32>,
    %c0_14 = arith.constant 0 : index
    %c512 = arith.constant 512 : index
    %13 = vector.load %arg7[%c0_14, %c512] : memref<8x1024xf32, #tpu.memory_space<vmem>>, vector<8x512xf32>
    tpu.vector_store %arg7[%c0_14, %c512], %11 {strides = array<i32>} : memref<8x1024xf32, #tpu.memory_space<vmem>>, vector<8x512xf32>,
    return
  }
  func.func @transform_0(%arg0: i32) -> (i32, i32) {
    %c0_i32 = arith.constant 0 : i32
    %c0_i32_0 = arith.constant 0 : i32
    return %arg0, %c0_i32 : i32, i32
  }
  func.func @transform_1(%arg0: i32) -> (i32, i32) {
    %c0_i32 = arith.constant 0 : i32
    %c0_i32_0 = arith.constant 0 : i32
    return %arg0, %c0_i32 : i32, i32
  }
  func.func @transform_2(%arg0: i32) -> (i32, i32) {
    %c0_i32 = arith.constant 0 : i32
    %c0_i32_0 = arith.constant 0 : i32
    %c0_i32_1 = arith.constant 0 : i32
    return %c0_i32, %c0_i32_0 : i32, i32
  }
  func.func @transform_3(%arg0: i32) -> (i32, i32) {
    %c0_i32 = arith.constant 0 : i32
    %c0_i32_0 = arith.constant 0 : i32
    %c0_i32_1 = arith.constant 0 : i32
    return %c0_i32, %c0_i32_0 : i32, i32
  }
  func.func @transform_4(%arg0: i32) -> (i32, i32) {
    %c0_i32 = arith.constant 0 : i32
    %c0_i32_0 = arith.constant 0 : i32
    %c0_i32_1 = arith.constant 0 : i32
    return %c0_i32, %c0_i32_0 : i32, i32
  }
  func.func @transform_5(%arg0: i32) -> (i32, i32) {
    %c0_i32 = arith.constant 0 : i32
    %c0_i32_0 = arith.constant 0 : i32
    %c0_i32_1 = arith.constant 0 : i32
    return %c0_i32, %c0_i32_0 : i32, i32
  }
  func.func @transform_6(%arg0: i32) -> (i32, i32) {
    %c0_i32 = arith.constant 0 : i32
    %c0_i32_0 = arith.constant 0 : i32
    return %arg0, %c0_i32 : i32, i32
  }
}

</mosaic_0001>

<llo_original>
// kernel: tpu_custom_call.1
$region0: #{tpu_custom_call.1}
  #allocation0 [shape = 'u32[]', space=smem, size = 0x4, offset = 0x4, fixed_abs, tag = 'smem constant byte address 0x4 - core index']
  #allocation1 [shape = 'u32[72,128]{1,0:T(1,128)}', space=vmem, size = 0x9000, scoped, tag = 'internal scratch']
  %s0 = inlined_call_operand.hbm [shape: f32[2,384], index: 0, kind: input, shape index: {}]
  %s1 = inlined_call_operand.hbm [shape: f32[2,768], index: 1, kind: input, shape index: {}]
  %s2 = inlined_call_operand.hbm [shape: f32[384,512], index: 2, kind: input, shape index: {}]
  %s3 = inlined_call_operand.hbm [shape: f32[1,512], index: 3, kind: input, shape index: {}]
  %s4 = inlined_call_operand.hbm [shape: f32[768,512], index: 4, kind: input, shape index: {}]
  %s5 = inlined_call_operand.hbm [shape: f32[1,512], index: 5, kind: input, shape index: {}]
  %s6 = inlined_call_operand.hbm [shape: f32[2,1024], index: 6, kind: output, shape index: {}]
  %s7 = sld [smem:[#allocation0]]
  $region58: #{tpu_custom_call.1} parent=0
    _
  %s9 = ssub.s32 1, %s7
  %s10 = scalar_select 0, %s9, %s7
  $region1: #{tpu_custom_call.1} parent=0
    #allocation2 [shape = 'u8[12288]{0}', space=vmem, size = 0x3000, scoped, tag = 'input window, operand 0, single buffered']
    #allocation3 [shape = 's32[1]{0}', space=sflag, size = 0x4, scoped, tag = 'scoped memory for tpu_custom_call.1']
    #allocation4 [shape = 's32[1]{0}', space=sflag, size = 0x4, scoped, tag = 'scoped memory for tpu_custom_call.1']
    #allocation5 [shape = 'u8[24576]{0}', space=vmem, size = 0x6000, scoped, tag = 'input window, operand 1, single buffered']
    #allocation6 [shape = 's32[1]{0}', space=sflag, size = 0x4, scoped, tag = 'scoped memory for tpu_custom_call.1']
    #allocation7 [shape = 'u8[786432]{0}', space=vmem, size = 0xc0000, scoped, tag = 'input window, operand 2, single buffered']
    #allocation8 [shape = 'u8[2048]{0}', space=vmem, size = 0x800, scoped, tag = 'input window, operand 3, single buffered']
    #allocation9 [shape = 's32[1]{0}', space=sflag, size = 0x4, scoped, tag = 'scoped memory for tpu_custom_call.1']
    #allocation10 [shape = 'u8[1572864]{0}', space=vmem, size = 0x180000, scoped, tag = 'input window, operand 4, single buffered']
    #allocation11 [shape = 'u8[2048]{0}', space=vmem, size = 0x800, scoped, tag = 'input window, operand 5, single buffered']
    #allocation12 [shape = 's32[1]{0}', space=sflag, size = 0x4, scoped, tag = 'scoped memory for tpu_custom_call.1']
    #allocation13 [shape = 'u8[32768]{0}', space=vmem, size = 0x8000, scoped, tag = 'output window, operand 0, single buffered']
    %11 = vsyncpa [#allocation3], 0
    %12 = vsyncpa [#allocation6], 0
    %13 = vsyncpa [#allocation9], 0
    %14 = vsyncpa [#allocation12], 0
    %15 = vsyncpa [#allocation4], 0
    // Predicated region
    $region2: #{tpu_custom_call.1} parent=1 // pred_check
      _
    $region3: #{tpu_custom_call.1} parent=1 // pred_check_branch
      %17 = sbr.rel (0) target = $region5
    $region4: #{tpu_custom_call.1} parent=1 // pred_region
      %19 = vsyncadd [#allocation3], 288
      %s20 = sshll.u32 %s0, 4
      %s21 = int_to_ptr.hbm [resolvable:$true] %s20
      %s22 = sshll.u32 [#allocation2], 4
      %s23 = int_to_ptr.vmem [resolvable:$true] %s22
      %28 = dma.hbm_to_vmem [thread:$0]  %s21, 96, %s23, [#allocation3], 96, 96, 6
    $region5: #{tpu_custom_call.1} parent=1 // pred_fallthru
      _
    // Predicated region
    $region6: #{tpu_custom_call.1} parent=1 // pred_check
      _
    $region7: #{tpu_custom_call.1} parent=1 // pred_check_branch
      %30 = sbr.rel (0) target = $region9
    $region8: #{tpu_custom_call.1} parent=1 // pred_region
      %32 = vsyncadd [#allocation6], 576
      %s33 = sshll.u32 %s1, 4
      %s34 = int_to_ptr.hbm [resolvable:$true] %s33
      %s35 = sshll.u32 [#allocation5], 4
      %s36 = int_to_ptr.vmem [resolvable:$true] %s35
      %41 = dma.hbm_to_vmem [thread:$0]  %s34, 192, %s36, [#allocation6], 192, 192, 12
    $region9: #{tpu_custom_call.1} parent=1 // pred_fallthru
      _
    // Predicated region
    $region10: #{tpu_custom_call.1} parent=1 // pred_check
      _
    $region11: #{tpu_custom_call.1} parent=1 // pred_check_branch
      %43 = sbr.rel (0) target = $region13
    $region12: #{tpu_custom_call.1} parent=1 // pred_region
      %45 = vsyncadd [#allocation6], 0
      %s46 = sshll.u32 %s2, 4
      %s47 = int_to_ptr.hbm [resolvable:$true] %s46
      %s48 = sshll.u32 [#allocation7], 4
      %s49 = int_to_ptr.vmem [resolvable:$true] %s48
      %54 = dma.hbm_to_vmem [thread:$0]  %s47, 24576, %s49, [#allocation6], 512, 512, 32
    $region13: #{tpu_custom_call.1} parent=1 // pred_fallthru
      _
    // Predicated region
    $region14: #{tpu_custom_call.1} parent=1 // pred_check
      _
    $region15: #{tpu_custom_call.1} parent=1 // pred_check_branch
      %56 = sbr.rel (0) target = $region17
    $region16: #{tpu_custom_call.1} parent=1 // pred_region
      %58 = vsyncadd [#allocation9], 0
      %s60 = sshll.u32 %s3, 4
      %s61 = int_to_ptr.hbm [resolvable:$true] %s60
      %s62 = sshll.u32 [#allocation8], 4
      %s63 = int_to_ptr.vmem [resolvable:$true] %s62
      %65 = dma.hbm_to_vmem [thread:$0]  %s61, 64, %s63, [#allocation9]
    $region17: #{tpu_custom_call.1} parent=1 // pred_fallthru
      _
    // Predicated region
    $region18: #{tpu_custom_call.1} parent=1 // pred_check
      _
    $region19: #{tpu_custom_call.1} parent=1 // pred_check_branch
      %67 = sbr.rel (0) target = $region21
    $region20: #{tpu_custom_call.1} parent=1 // pred_region
      %69 = vsyncadd [#allocation9], 0
      %s70 = sshll.u32 %s4, 4
      %s71 = int_to_ptr.hbm [resolvable:$true] %s70
      %s72 = sshll.u32 [#allocation10], 4
      %s73 = int_to_ptr.vmem [resolvable:$true] %s72
      %78 = dma.hbm_to_vmem [thread:$0]  %s71, 49152, %s73, [#allocation9], 512, 512, 32
    $region21: #{tpu_custom_call.1} parent=1 // pred_fallthru
      _
    // Predicated region
    $region22: #{tpu_custom_call.1} parent=1 // pred_check
      _
    $region23: #{tpu_custom_call.1} parent=1 // pred_check_branch
      %80 = sbr.rel (0) target = $region25
    $region24: #{tpu_custom_call.1} parent=1 // pred_region
      %82 = vsyncadd [#allocation12], 0
      %s84 = sshll.u32 %s5, 4
      %s85 = int_to_ptr.hbm [resolvable:$true] %s84
      %s86 = sshll.u32 [#allocation11], 4
      %s87 = int_to_ptr.vmem [resolvable:$true] %s86
      %89 = dma.hbm_to_vmem [thread:$0]  %s85, 64, %s87, [#allocation12]
    $region25: #{tpu_custom_call.1} parent=1 // pred_fallthru
      _
    // Predicated region
    $region26: #{tpu_custom_call.1} parent=1 // pred_check
      _
    $region27: #{tpu_custom_call.1} parent=1 // pred_check_branch
      %91 = sbr.rel (0) target = $region29
    $region28: #{tpu_custom_call.1} parent=1 // pred_region
      %93 = dma.done [#allocation3], 384
    $region29: #{tpu_custom_call.1} parent=1 // pred_fallthru
      _
    // Predicated region
    $region30: #{tpu_custom_call.1} parent=1 // pred_check
      _
    $region31: #{tpu_custom_call.1} parent=1 // pred_check_branch
      %95 = sbr.rel (0) target = $region33
    $region32: #{tpu_custom_call.1} parent=1 // pred_region
      %97 = dma.done [#allocation6], 768
    $region33: #{tpu_custom_call.1} parent=1 // pred_fallthru
      _
    // Predicated region
    $region34: #{tpu_custom_call.1} parent=1 // pred_check
      _
    $region35: #{tpu_custom_call.1} parent=1 // pred_check_branch
      %99 = sbr.rel (0) target = $region37
    $region36: #{tpu_custom_call.1} parent=1 // pred_region
      %101 = dma.done [#allocation6], 24576
    $region37: #{tpu_custom_call.1} parent=1 // pred_fallthru
      _
    // Predicated region
    $region38: #{tpu_custom_call.1} parent=1 // pred_check
      _
    $region39: #{tpu_custom_call.1} parent=1 // pred_check_branch
      %103 = sbr.rel (0) target = $region41
    $region40: #{tpu_custom_call.1} parent=1 // pred_region
      %105 = dma.done [#allocation9], 64
    $region41: #{tpu_custom_call.1} parent=1 // pred_fallthru
      _
    // Predicated region
    $region42: #{tpu_custom_call.1} parent=1 // pred_check
      _
    $region43: #{tpu_custom_call.1} parent=1 // pred_check_branch
      %107 = sbr.rel (0) target = $region45
    $region44: #{tpu_custom_call.1} parent=1 // pred_region
      %109 = dma.done [#allocation9], 49152
    $region45: #{tpu_custom_call.1} parent=1 // pred_fallthru
      _
    // Predicated region
    $region46: #{tpu_custom_call.1} parent=1 // pred_check
      _
    $region47: #{tpu_custom_call.1} parent=1 // pred_check_branch
      %111 = sbr.rel (0) target = $region49
    $region48: #{tpu_custom_call.1} parent=1 // pred_region
      %113 = dma.done [#allocation12], 64
    $region49: #{tpu_custom_call.1} parent=1 // pred_fallthru
      _
    %v114 = vld [vmem:[#allocation2] sm:$0x3f]
    %v115 = vld [vmem:[#allocation2 + $0x6] sm:$0x3f]
    %v116 = vld [vmem:[#allocation2 + $0xc] sm:$0x3f]
    %v117 = vld [vmem:[#allocation2 + $0x12] sm:$0x3f]
    %v118 = vld [vmem:[#allocation5] sm:$0xff]
    %v119 = vld [vmem:[#allocation5 + $0x8] sm:$0xf]
    %v120 = vld [vmem:[#allocation5 + $0xc] sm:$0xff]
    %v121 = vld [vmem:[#allocation5 + $0x14] sm:$0xf]
    %v122 = vld [vmem:[#allocation5 + $0x18] sm:$0xff]
    %v123 = vld [vmem:[#allocation5 + $0x20] sm:$0xf]
    %v124 = vld [vmem:[#allocation5 + $0x24] sm:$0xff]
    %v125 = vld [vmem:[#allocation5 + $0x2c] sm:$0xf]
    %v126 = vld [vmem:[#allocation7] sm:$0xff]
    %v127 = vld [vmem:[#allocation7 + $0x8] sm:$0xff]
    %v128 = vld [vmem:[#allocation7 + $0x10] sm:$0xff]
    %v129 = vld [vmem:[#allocation7 + $0x18] sm:$0xff]
    %v130 = vld [vmem:[#allocation7 + $0x20] sm:$0xff]
    %v131 = vld [vmem:[#allocation7 + $0x28] sm:$0xff]
    %v132 = vld [vmem:[#allocation7 + $0x30] sm:$0xff]
    %v133 = vld [vmem:[#allocation7 + $0x38] sm:$0xff]
    %v134 = vld [vmem:[#allocation7 + $0x40] sm:$0xff]
    %v135 = vld [vmem:[#allocation7 + $0x48] sm:$0xff]
    %v136 = vld [vmem:[#allocation7 + $0x50] sm:$0xff]
    %v137 = vld [vmem:[#allocation7 + $0x58] sm:$0xff]
    %v138 = vld [vmem:[#allocation7 + $0x60] sm:$0xff]
    %v139 = vld [vmem:[#allocation7 + $0x68] sm:$0xff]
    %v140 = vld [vmem:[#allocation7 + $0x70] sm:$0xff]
    %v141 = vld [vmem:[#allocation7 + $0x78] sm:$0xff]
    %v142 = vld [vmem:[#allocation7 + $0x80] sm:$0xff]
    %v143 = vld [vmem:[#allocation7 + $0x88] sm:$0xff]
    %v144 = vld [vmem:[#allocation7 + $0x90] sm:$0xff]
    %v145 = vld [vmem:[#allocation7 + $0x98] sm:$0xff]
    %v146 = vld [vmem:[#allocation7 + $0xa0] sm:$0xff]
    %v147 = vld [vmem:[#allocation7 + $0xa8] sm:$0xff]
    %v148 = vld [vmem:[#allocation7 + $0xb0] sm:$0xff]
    %v149 = vld [vmem:[#allocation7 + $0xb8] sm:$0xff]
    %v150 = vld [vmem:[#allocation7 + $0xc0] sm:$0xff]
    %v151 = vld [vmem:[#allocation7 + $0xc8] sm:$0xff]
    %v152 = vld [vmem:[#allocation7 + $0xd0] sm:$0xff]
    %v153 = vld [vmem:[#allocation7 + $0xd8] sm:$0xff]
    %v154 = vld [vmem:[#allocation7 + $0xe0] sm:$0xff]
    %v155 = vld [vmem:[#allocation7 + $0xe8] sm:$0xff]
    %v156 = vld [vmem:[#allocation7 + $0xf0] sm:$0xff]
    %v157 = vld [vmem:[#allocation7 + $0xf8] sm:$0xff]
    %v158 = vld [vmem:[#allocation7 + $0x100] sm:$0xff]
    %v159 = vld [vmem:[#allocation7 + $0x108] sm:$0xff]
    %v160 = vld [vmem:[#allocation7 + $0x110] sm:$0xff]
    %v161 = vld [vmem:[#allocation7 + $0x118] sm:$0xff]
    %v162 = vld [vmem:[#allocation7 + $0x120] sm:$0xff]
    %v163 = vld [vmem:[#allocation7 + $0x128] sm:$0xff]
    %v164 = vld [vmem:[#allocation7 + $0x130] sm:$0xff]
    %v165 = vld [vmem:[#allocation7 + $0x138] sm:$0xff]
    %v166 = vld [vmem:[#allocation7 + $0x140] sm:$0xff]
    %v167 = vld [vmem:[#allocation7 + $0x148] sm:$0xff]
    %v168 = vld [vmem:[#allocation7 + $0x150] sm:$0xff]
    %v169 = vld [vmem:[#allocation7 + $0x158] sm:$0xff]
    %v170 = vld [vmem:[#allocation7 + $0x160] sm:$0xff]
    %v171 = vld [vmem:[#allocation7 + $0x168] sm:$0xff]
    %v172 = vld [vmem:[#allocation7 + $0x170] sm:$0xff]
    %v173 = vld [vmem:[#allocation7 + $0x178] sm:$0xff]
    %v174 = vld [vmem:[#allocation7 + $0x180] sm:$0xff]
    %v175 = vld [vmem:[#allocation7 + $0x188] sm:$0xff]
    %v176 = vld [vmem:[#allocation7 + $0x190] sm:$0xff]
    %v177 = vld [vmem:[#allocation7 + $0x198] sm:$0xff]
    %v178 = vld [vmem:[#allocation7 + $0x1a0] sm:$0xff]
    %v179 = vld [vmem:[#allocation7 + $0x1a8] sm:$0xff]
    %v180 = vld [vmem:[#allocation7 + $0x1b0] sm:$0xff]
    %v181 = vld [vmem:[#allocation7 + $0x1b8] sm:$0xff]
    %v182 = vld [vmem:[#allocation7 + $0x1c0] sm:$0xff]
    %v183 = vld [vmem:[#allocation7 + $0x1c8] sm:$0xff]
    %v184 = vld [vmem:[#allocation7 + $0x1d0] sm:$0xff]
    %v185 = vld [vmem:[#allocation7 + $0x1d8] sm:$0xff]
    %v186 = vld [vmem:[#allocation7 + $0x1e0] sm:$0xff]
    %v187 = vld [vmem:[#allocation7 + $0x1e8] sm:$0xff]
    %v188 = vld [vmem:[#allocation7 + $0x1f0] sm:$0xff]
    %v189 = vld [vmem:[#allocation7 + $0x1f8] sm:$0xff]
    %v190 = vld [vmem:[#allocation7 + $0x200] sm:$0xff]
    %v191 = vld [vmem:[#allocation7 + $0x208] sm:$0xff]
    %v192 = vld [vmem:[#allocation7 + $0x210] sm:$0xff]
    %v193 = vld [vmem:[#allocation7 + $0x218] sm:$0xff]
    %v194 = vld [vmem:[#allocation7 + $0x220] sm:$0xff]
    %v195 = vld [vmem:[#allocation7 + $0x228] sm:$0xff]
    %v196 = vld [vmem:[#allocation7 + $0x230] sm:$0xff]
    %v197 = vld [vmem:[#allocation7 + $0x238] sm:$0xff]
    %v198 = vld [vmem:[#allocation7 + $0x240] sm:$0xff]
    %v199 = vld [vmem:[#allocation7 + $0x248] sm:$0xff]
    %v200 = vld [vmem:[#allocation7 + $0x250] sm:$0xff]
    %v201 = vld [vmem:[#allocation7 + $0x258] sm:$0xff]
    %v202 = vld [vmem:[#allocation7 + $0x260] sm:$0xff]
    %v203 = vld [vmem:[#allocation7 + $0x268] sm:$0xff]
    %v204 = vld [vmem:[#allocation7 + $0x270] sm:$0xff]
    %v205 = vld [vmem:[#allocation7 + $0x278] sm:$0xff]
    %v206 = vld [vmem:[#allocation7 + $0x280] sm:$0xff]
    %v207 = vld [vmem:[#allocation7 + $0x288] sm:$0xff]
    %v208 = vld [vmem:[#allocation7 + $0x290] sm:$0xff]
    %v209 = vld [vmem:[#allocation7 + $0x298] sm:$0xff]
    %v210 = vld [vmem:[#allocation7 + $0x2a0] sm:$0xff]
    %v211 = vld [vmem:[#allocation7 + $0x2a8] sm:$0xff]
    %v212 = vld [vmem:[#allocation7 + $0x2b0] sm:$0xff]
    %v213 = vld [vmem:[#allocation7 + $0x2b8] sm:$0xff]
    %v214 = vld [vmem:[#allocation7 + $0x2c0] sm:$0xff]
    %v215 = vld [vmem:[#allocation7 + $0x2c8] sm:$0xff]
    %v216 = vld [vmem:[#allocation7 + $0x2d0] sm:$0xff]
    %v217 = vld [vmem:[#allocation7 + $0x2d8] sm:$0xff]
    %v218 = vld [vmem:[#allocation7 + $0x2e0] sm:$0xff]
    %v219 = vld [vmem:[#allocation7 + $0x2e8] sm:$0xff]
    %v220 = vld [vmem:[#allocation7 + $0x2f0] sm:$0xff]
    %v221 = vld [vmem:[#allocation7 + $0x2f8] sm:$0xff]
    %v222 = vld [vmem:[#allocation7 + $0x300] sm:$0xff]
    %v223 = vld [vmem:[#allocation7 + $0x308] sm:$0xff]
    %v224 = vld [vmem:[#allocation7 + $0x310] sm:$0xff]
    %v225 = vld [vmem:[#allocation7 + $0x318] sm:$0xff]
    %v226 = vld [vmem:[#allocation7 + $0x320] sm:$0xff]
    %v227 = vld [vmem:[#allocation7 + $0x328] sm:$0xff]
    %v228 = vld [vmem:[#allocation7 + $0x330] sm:$0xff]
    %v229 = vld [vmem:[#allocation7 + $0x338] sm:$0xff]
    %v230 = vld [vmem:[#allocation7 + $0x340] sm:$0xff]
    %v231 = vld [vmem:[#allocation7 + $0x348] sm:$0xff]
    %v232 = vld [vmem:[#allocation7 + $0x350] sm:$0xff]
    %v233 = vld [vmem:[#allocation7 + $0x358] sm:$0xff]
    %v234 = vld [vmem:[#allocation7 + $0x360] sm:$0xff]
    %v235 = vld [vmem:[#allocation7 + $0x368] sm:$0xff]
    %v236 = vld [vmem:[#allocation7 + $0x370] sm:$0xff]
    %v237 = vld [vmem:[#allocation7 + $0x378] sm:$0xff]
    %v238 = vld [vmem:[#allocation7 + $0x380] sm:$0xff]
    %v239 = vld [vmem:[#allocation7 + $0x388] sm:$0xff]
    %v240 = vld [vmem:[#allocation7 + $0x390] sm:$0xff]
    %v241 = vld [vmem:[#allocation7 + $0x398] sm:$0xff]
    %v242 = vld [vmem:[#allocation7 + $0x3a0] sm:$0xff]
    %v243 = vld [vmem:[#allocation7 + $0x3a8] sm:$0xff]
    %v244 = vld [vmem:[#allocation7 + $0x3b0] sm:$0xff]
    %v245 = vld [vmem:[#allocation7 + $0x3b8] sm:$0xff]
    %v246 = vld [vmem:[#allocation7 + $0x3c0] sm:$0xff]
    %v247 = vld [vmem:[#allocation7 + $0x3c8] sm:$0xff]
    %v248 = vld [vmem:[#allocation7 + $0x3d0] sm:$0xff]
    %v249 = vld [vmem:[#allocation7 + $0x3d8] sm:$0xff]
    %v250 = vld [vmem:[#allocation7 + $0x3e0] sm:$0xff]
    %v251 = vld [vmem:[#allocation7 + $0x3e8] sm:$0xff]
    %v252 = vld [vmem:[#allocation7 + $0x3f0] sm:$0xff]
    %v253 = vld [vmem:[#allocation7 + $0x3f8] sm:$0xff]
    %v254 = vld [vmem:[#allocation7 + $0x400] sm:$0xff]
    %v255 = vld [vmem:[#allocation7 + $0x408] sm:$0xff]
    %v256 = vld [vmem:[#allocation7 + $0x410] sm:$0xff]
    %v257 = vld [vmem:[#allocation7 + $0x418] sm:$0xff]
    %v258 = vld [vmem:[#allocation7 + $0x420] sm:$0xff]
    %v259 = vld [vmem:[#allocation7 + $0x428] sm:$0xff]
    %v260 = vld [vmem:[#allocation7 + $0x430] sm:$0xff]
    %v261 = vld [vmem:[#allocation7 + $0x438] sm:$0xff]
    %v262 = vld [vmem:[#allocation7 + $0x440] sm:$0xff]
    %v263 = vld [vmem:[#allocation7 + $0x448] sm:$0xff]
    %v264 = vld [vmem:[#allocation7 + $0x450] sm:$0xff]
    %v265 = vld [vmem:[#allocation7 + $0x458] sm:$0xff]
    %v266 = vld [vmem:[#allocation7 + $0x460] sm:$0xff]
    %v267 = vld [vmem:[#allocation7 + $0x468] sm:$0xff]
    %v268 = vld [vmem:[#allocation7 + $0x470] sm:$0xff]
    %v269 = vld [vmem:[#allocation7 + $0x478] sm:$0xff]
    %v270 = vld [vmem:[#allocation7 + $0x480] sm:$0xff]
    %v271 = vld [vmem:[#allocation7 + $0x488] sm:$0xff]
    %v272 = vld [vmem:[#allocation7 + $0x490] sm:$0xff]
    %v273 = vld [vmem:[#allocation7 + $0x498] sm:$0xff]
    %v274 = vld [vmem:[#allocation7 + $0x4a0] sm:$0xff]
    %v275 = vld [vmem:[#allocation7 + $0x4a8] sm:$0xff]
    %v276 = vld [vmem:[#allocation7 + $0x4b0] sm:$0xff]
    %v277 = vld [vmem:[#allocation7 + $0x4b8] sm:$0xff]
    %v278 = vld [vmem:[#allocation7 + $0x4c0] sm:$0xff]
    %v279 = vld [vmem:[#allocation7 + $0x4c8] sm:$0xff]
    %v280 = vld [vmem:[#allocation7 + $0x4d0] sm:$0xff]
    %v281 = vld [vmem:[#allocation7 + $0x4d8] sm:$0xff]
    %v282 = vld [vmem:[#allocation7 + $0x4e0] sm:$0xff]
    %v283 = vld [vmem:[#allocation7 + $0x4e8] sm:$0xff]
    %v284 = vld [vmem:[#allocation7 + $0x4f0] sm:$0xff]
    %v285 = vld [vmem:[#allocation7 + $0x4f8] sm:$0xff]
    %v286 = vld [vmem:[#allocation7 + $0x500] sm:$0xff]
    %v287 = vld [vmem:[#allocation7 + $0x508] sm:$0xff]
    %v288 = vld [vmem:[#allocation7 + $0x510] sm:$0xff]
    %v289 = vld [vmem:[#allocation7 + $0x518] sm:$0xff]
    %v290 = vld [vmem:[#allocation7 + $0x520] sm:$0xff]
    %v291 = vld [vmem:[#allocation7 + $0x528] sm:$0xff]
    %v292 = vld [vmem:[#allocation7 + $0x530] sm:$0xff]
    %v293 = vld [vmem:[#allocation7 + $0x538] sm:$0xff]
    %v294 = vld [vmem:[#allocation7 + $0x540] sm:$0xff]
    %v295 = vld [vmem:[#allocation7 + $0x548] sm:$0xff]
    %v296 = vld [vmem:[#allocation7 + $0x550] sm:$0xff]
    %v297 = vld [vmem:[#allocation7 + $0x558] sm:$0xff]
    %v298 = vld [vmem:[#allocation7 + $0x560] sm:$0xff]
    %v299 = vld [vmem:[#allocation7 + $0x568] sm:$0xff]
    %v300 = vld [vmem:[#allocation7 + $0x570] sm:$0xff]
    %v301 = vld [vmem:[#allocation7 + $0x578] sm:$0xff]
    %v302 = vld [vmem:[#allocation7 + $0x580] sm:$0xff]
    %v303 = vld [vmem:[#allocation7 + $0x588] sm:$0xff]
    %v304 = vld [vmem:[#allocation7 + $0x590] sm:$0xff]
    %v305 = vld [vmem:[#allocation7 + $0x598] sm:$0xff]
    %v306 = vld [vmem:[#allocation7 + $0x5a0] sm:$0xff]
    %v307 = vld [vmem:[#allocation7 + $0x5a8] sm:$0xff]
    %v308 = vld [vmem:[#allocation7 + $0x5b0] sm:$0xff]
    %v309 = vld [vmem:[#allocation7 + $0x5b8] sm:$0xff]
    %v310 = vld [vmem:[#allocation7 + $0x5c0] sm:$0xff]
    %v311 = vld [vmem:[#allocation7 + $0x5c8] sm:$0xff]
    %v312 = vld [vmem:[#allocation7 + $0x5d0] sm:$0xff]
    %v313 = vld [vmem:[#allocation7 + $0x5d8] sm:$0xff]
    %v314 = vld [vmem:[#allocation7 + $0x5e0] sm:$0xff]
    %v315 = vld [vmem:[#allocation7 + $0x5e8] sm:$0xff]
    %v316 = vld [vmem:[#allocation7 + $0x5f0] sm:$0xff]
    %v317 = vld [vmem:[#allocation7 + $0x5f8] sm:$0xff]
    %v318 = vld [vmem:[#allocation8] sm:$0xf]
    %v320 = vperm.slane %v318, 0
    %v321 = vperm.slane %v318, 1
    %v322 = vperm.slane %v318, 2
    %v323 = vperm.slane %v318, 3
    %332 = vst [vmem:[#allocation1] ss:$4 sm:$0xff] %v114
    %s333 = scalar_lea.vmem [#allocation1], 1
    %334 = vst [vmem:[%s333] ss:$4 sm:$0xff] %v115
    %s335 = scalar_lea.vmem [#allocation1], 2
    %336 = vst [vmem:[%s335] ss:$4 sm:$0xff] %v116
    %s337 = scalar_lea.vmem [#allocation1], 3
    %338 = vst [vmem:[%s337] ss:$4 sm:$0xff] %v117
    %v339 = vld.sshfl [vmem:[#allocation1] sm:$0xff pattern:$0x73625140]
    %v340 = vld.sshfl [vmem:[#allocation1 + $0x8] sm:$0xff pattern:$0x73625140]
    %v341 = vld.sshfl [vmem:[#allocation1 + $0x10] sm:$0xff pattern:$0x73625140]
    %345 = vmatpush.msra.mxu0 %v186
    %346 = vmatpush.msra.mxu0 %v182
    %347 = vmatpush.msra.mxu0 %v178
    %348 = vmatpush.msra.mxu0 %v174
    %349 = vmatpush.msra.mxu0 %v170
    %350 = vmatpush.msra.mxu0 %v166
    %351 = vmatpush.msra.mxu0 %v162
    %352 = vmatpush.msra.mxu0 %v158
    %353 = vmatpush.msra.mxu0 %v154
    %354 = vmatpush.msra.mxu0 %v150
    %355 = vmatpush.msra.mxu0 %v146
    %356 = vmatpush.msra.mxu0 %v142
    %357 = vmatpush.msra.mxu0 %v138
    %358 = vmatpush.msra.mxu0 %v134
    %359 = vmatpush.msra.mxu0 %v130
    %360 = vmatpush.msra.mxu0 %v126
    %361 = vmatmul.f32.gmra.mxu0 %v339
    %v362 = vpop.f32.mrf.mxu0
    %v363 = vadd.f32 %v320, %v362
    %364 = vdwg.mxu0
    %365 = vmatpush.msra.mxu0 %v250
    %366 = vmatpush.msra.mxu0 %v246
    %367 = vmatpush.msra.mxu0 %v242
    %368 = vmatpush.msra.mxu0 %v238
    %369 = vmatpush.msra.mxu0 %v234
    %370 = vmatpush.msra.mxu0 %v230
    %371 = vmatpush.msra.mxu0 %v226
    %372 = vmatpush.msra.mxu0 %v222
    %373 = vmatpush.msra.mxu0 %v218
    %374 = vmatpush.msra.mxu0 %v214
    %375 = vmatpush.msra.mxu0 %v210
    %376 = vmatpush.msra.mxu0 %v206
    %377 = vmatpush.msra.mxu0 %v202
    %378 = vmatpush.msra.mxu0 %v198
    %379 = vmatpush.msra.mxu0 %v194
    %380 = vmatpush.msra.mxu0 %v190
    %381 = vmatmul.f32.gmra.mxu0 %v340
    %v382 = vpop.f32.mrf.mxu0
    %v383 = vadd.f32 %v363, %v382
    %384 = vdwg.mxu0
    %385 = vmatpush.msra.mxu0 %v314
    %386 = vmatpush.msra.mxu0 %v310
    %387 = vmatpush.msra.mxu0 %v306
    %388 = vmatpush.msra.mxu0 %v302
    %389 = vmatpush.msra.mxu0 %v298
    %390 = vmatpush.msra.mxu0 %v294
    %391 = vmatpush.msra.mxu0 %v290
    %392 = vmatpush.msra.mxu0 %v286
    %393 = vmatpush.msra.mxu0 %v282
    %394 = vmatpush.msra.mxu0 %v278
    %395 = vmatpush.msra.mxu0 %v274
    %396 = vmatpush.msra.mxu0 %v270
    %397 = vmatpush.msra.mxu0 %v266
    %398 = vmatpush.msra.mxu0 %v262
    %399 = vmatpush.msra.mxu0 %v258
    %400 = vmatpush.msra.mxu0 %v254
    %401 = vmatmul.f32.gmra.mxu0 %v341
    %v402 = vpop.f32.mrf.mxu0
    %v403 = vadd.f32 %v383, %v402
    %404 = vdwg.mxu0
    %405 = vmatpush.msra.mxu0 %v187
    %406 = vmatpush.msra.mxu0 %v183
    %407 = vmatpush.msra.mxu0 %v179
    %408 = vmatpush.msra.mxu0 %v175
    %409 = vmatpush.msra.mxu0 %v171
    %410 = vmatpush.msra.mxu0 %v167
    %411 = vmatpush.msra.mxu0 %v163
    %412 = vmatpush.msra.mxu0 %v159
    %413 = vmatpush.msra.mxu0 %v155
    %414 = vmatpush.msra.mxu0 %v151
    %415 = vmatpush.msra.mxu0 %v147
    %416 = vmatpush.msra.mxu0 %v143
    %417 = vmatpush.msra.mxu0 %v139
    %418 = vmatpush.msra.mxu0 %v135
    %419 = vmatpush.msra.mxu0 %v131
    %420 = vmatpush.msra.mxu0 %v127
    %421 = vmatmul.f32.gmra.mxu0 %v339
    %v422 = vpop.f32.mrf.mxu0
    %v423 = vadd.f32 %v321, %v422
    %424 = vdwg.mxu0
    %425 = vmatpush.msra.mxu0 %v251
    %426 = vmatpush.msra.mxu0 %v247
    %427 = vmatpush.msra.mxu0 %v243
    %428 = vmatpush.msra.mxu0 %v239
    %429 = vmatpush.msra.mxu0 %v235
    %430 = vmatpush.msra.mxu0 %v231
    %431 = vmatpush.msra.mxu0 %v227
    %432 = vmatpush.msra.mxu0 %v223
    %433 = vmatpush.msra.mxu0 %v219
    %434 = vmatpush.msra.mxu0 %v215
    %435 = vmatpush.msra.mxu0 %v211
    %436 = vmatpush.msra.mxu0 %v207
    %437 = vmatpush.msra.mxu0 %v203
    %438 = vmatpush.msra.mxu0 %v199
    %439 = vmatpush.msra.mxu0 %v195
    %440 = vmatpush.msra.mxu0 %v191
    %441 = vmatmul.f32.gmra.mxu0 %v340
    %v442 = vpop.f32.mrf.mxu0
    %v443 = vadd.f32 %v423, %v442
    %444 = vdwg.mxu0
    %445 = vmatpush.msra.mxu0 %v315
    %446 = vmatpush.msra.mxu0 %v311
    %447 = vmatpush.msra.mxu0 %v307
    %448 = vmatpush.msra.mxu0 %v303
    %449 = vmatpush.msra.mxu0 %v299
    %450 = vmatpush.msra.mxu0 %v295
    %451 = vmatpush.msra.mxu0 %v291
    %452 = vmatpush.msra.mxu0 %v287
    %453 = vmatpush.msra.mxu0 %v283
    %454 = vmatpush.msra.mxu0 %v279
    %455 = vmatpush.msra.mxu0 %v275
    %456 = vmatpush.msra.mxu0 %v271
    %457 = vmatpush.msra.mxu0 %v267
    %458 = vmatpush.msra.mxu0 %v263
    %459 = vmatpush.msra.mxu0 %v259
    %460 = vmatpush.msra.mxu0 %v255
    %461 = vmatmul.f32.gmra.mxu0 %v341
    %v462 = vpop.f32.mrf.mxu0
    %v463 = vadd.f32 %v443, %v462
    %464 = vdwg.mxu0
    %465 = vmatpush.msra.mxu0 %v188
    %466 = vmatpush.msra.mxu0 %v184
    %467 = vmatpush.msra.mxu0 %v180
    %468 = vmatpush.msra.mxu0 %v176
    %469 = vmatpush.msra.mxu0 %v172
    %470 = vmatpush.msra.mxu0 %v168
    %471 = vmatpush.msra.mxu0 %v164
    %472 = vmatpush.msra.mxu0 %v160
    %473 = vmatpush.msra.mxu0 %v156
    %474 = vmatpush.msra.mxu0 %v152
    %475 = vmatpush.msra.mxu0 %v148
    %476 = vmatpush.msra.mxu0 %v144
    %477 = vmatpush.msra.mxu0 %v140
    %478 = vmatpush.msra.mxu0 %v136
    %479 = vmatpush.msra.mxu0 %v132
    %480 = vmatpush.msra.mxu0 %v128
    %481 = vmatmul.f32.gmra.mxu0 %v339
    %v482 = vpop.f32.mrf.mxu0
    %v483 = vadd.f32 %v322, %v482
    %484 = vdwg.mxu0
    %485 = vmatpush.msra.mxu0 %v252
    %486 = vmatpush.msra.mxu0 %v248
    %487 = vmatpush.msra.mxu0 %v244
    %488 = vmatpush.msra.mxu0 %v240
    %489 = vmatpush.msra.mxu0 %v236
    %490 = vmatpush.msra.mxu0 %v232
    %491 = vmatpush.msra.mxu0 %v228
    %492 = vmatpush.msra.mxu0 %v224
    %493 = vmatpush.msra.mxu0 %v220
    %494 = vmatpush.msra.mxu0 %v216
    %495 = vmatpush.msra.mxu0 %v212
    %496 = vmatpush.msra.mxu0 %v208
    %497 = vmatpush.msra.mxu0 %v204
    %498 = vmatpush.msra.mxu0 %v200
    %499 = vmatpush.msra.mxu0 %v196
    %500 = vmatpush.msra.mxu0 %v192
    %501 = vmatmul.f32.gmra.mxu0 %v340
    %v502 = vpop.f32.mrf.mxu0
    %v503 = vadd.f32 %v483, %v502
    %504 = vdwg.mxu0
    %505 = vmatpush.msra.mxu0 %v316
    %506 = vmatpush.msra.mxu0 %v312
    %507 = vmatpush.msra.mxu0 %v308
    %508 = vmatpush.msra.mxu0 %v304
    %509 = vmatpush.msra.mxu0 %v300
    %510 = vmatpush.msra.mxu0 %v296
    %511 = vmatpush.msra.mxu0 %v292
    %512 = vmatpush.msra.mxu0 %v288
    %513 = vmatpush.msra.mxu0 %v284
    %514 = vmatpush.msra.mxu0 %v280
    %515 = vmatpush.msra.mxu0 %v276
    %516 = vmatpush.msra.mxu0 %v272
    %517 = vmatpush.msra.mxu0 %v268
    %518 = vmatpush.msra.mxu0 %v264
    %519 = vmatpush.msra.mxu0 %v260
    %520 = vmatpush.msra.mxu0 %v256
    %521 = vmatmul.f32.gmra.mxu0 %v341
    %v522 = vpop.f32.mrf.mxu0
    %v523 = vadd.f32 %v503, %v522
    %524 = vdwg.mxu0
    %525 = vmatpush.msra.mxu0 %v189
    %526 = vmatpush.msra.mxu0 %v185
    %527 = vmatpush.msra.mxu0 %v181
    %528 = vmatpush.msra.mxu0 %v177
    %529 = vmatpush.msra.mxu0 %v173
    %530 = vmatpush.msra.mxu0 %v169
    %531 = vmatpush.msra.mxu0 %v165
    %532 = vmatpush.msra.mxu0 %v161
    %533 = vmatpush.msra.mxu0 %v157
    %534 = vmatpush.msra.mxu0 %v153
    %535 = vmatpush.msra.mxu0 %v149
    %536 = vmatpush.msra.mxu0 %v145
    %537 = vmatpush.msra.mxu0 %v141
    %538 = vmatpush.msra.mxu0 %v137
    %539 = vmatpush.msra.mxu0 %v133
    %540 = vmatpush.msra.mxu0 %v129
    %541 = vmatmul.f32.gmra.mxu0 %v339
    %v542 = vpop.f32.mrf.mxu0
    %v543 = vadd.f32 %v323, %v542
    %544 = vdwg.mxu0
    %545 = vmatpush.msra.mxu0 %v253
    %546 = vmatpush.msra.mxu0 %v249
    %547 = vmatpush.msra.mxu0 %v245
    %548 = vmatpush.msra.mxu0 %v241
    %549 = vmatpush.msra.mxu0 %v237
    %550 = vmatpush.msra.mxu0 %v233
    %551 = vmatpush.msra.mxu0 %v229
    %552 = vmatpush.msra.mxu0 %v225
    %553 = vmatpush.msra.mxu0 %v221
    %554 = vmatpush.msra.mxu0 %v217
    %555 = vmatpush.msra.mxu0 %v213
    %556 = vmatpush.msra.mxu0 %v209
    %557 = vmatpush.msra.mxu0 %v205
    %558 = vmatpush.msra.mxu0 %v201
    %559 = vmatpush.msra.mxu0 %v197
    %560 = vmatpush.msra.mxu0 %v193
    %561 = vmatmul.f32.gmra.mxu0 %v340
    %v562 = vpop.f32.mrf.mxu0
    %v563 = vadd.f32 %v543, %v562
    %564 = vdwg.mxu0
    %565 = vmatpush.msra.mxu0 %v317
    %566 = vmatpush.msra.mxu0 %v313
    %567 = vmatpush.msra.mxu0 %v309
    %568 = vmatpush.msra.mxu0 %v305
    %569 = vmatpush.msra.mxu0 %v301
    %570 = vmatpush.msra.mxu0 %v297
    %571 = vmatpush.msra.mxu0 %v293
    %572 = vmatpush.msra.mxu0 %v289
    %573 = vmatpush.msra.mxu0 %v285
    %574 = vmatpush.msra.mxu0 %v281
    %575 = vmatpush.msra.mxu0 %v277
    %576 = vmatpush.msra.mxu0 %v273
    %577 = vmatpush.msra.mxu0 %v269
    %578 = vmatpush.msra.mxu0 %v265
    %579 = vmatpush.msra.mxu0 %v261
    %580 = vmatpush.msra.mxu0 %v257
    %581 = vmatmul.f32.gmra.mxu0 %v341
    %v582 = vpop.f32.mrf.mxu0
    %v583 = vadd.f32 %v563, %v582
    %584 = vdwg.mxu0
    %v585 = vld [vmem:[#allocation10] sm:$0xff]
    %v586 = vld [vmem:[#allocation10 + $0x8] sm:$0xff]
    %v587 = vld [vmem:[#allocation10 + $0x10] sm:$0xff]
    %v588 = vld [vmem:[#allocation10 + $0x18] sm:$0xff]
    %v589 = vld [vmem:[#allocation10 + $0x20] sm:$0xff]
    %v590 = vld [vmem:[#allocation10 + $0x28] sm:$0xff]
    %v591 = vld [vmem:[#allocation10 + $0x30] sm:$0xff]
    %v592 = vld [vmem:[#allocation10 + $0x38] sm:$0xff]
    %v593 = vld [vmem:[#allocation10 + $0x40] sm:$0xff]
    %v594 = vld [vmem:[#allocation10 + $0x48] sm:$0xff]
    %v595 = vld [vmem:[#allocation10 + $0x50] sm:$0xff]
    %v596 = vld [vmem:[#allocation10 + $0x58] sm:$0xff]
    %v597 = vld [vmem:[#allocation10 + $0x60] sm:$0xff]
    %v598 = vld [vmem:[#allocation10 + $0x68] sm:$0xff]
    %v599 = vld [vmem:[#allocation10 + $0x70] sm:$0xff]
    %v600 = vld [vmem:[#allocation10 + $0x78] sm:$0xff]
    %v601 = vld [vmem:[#allocation10 + $0x80] sm:$0xff]
    %v602 = vld [vmem:[#allocation10 + $0x88] sm:$0xff]
    %v603 = vld [vmem:[#allocation10 + $0x90] sm:$0xff]
    %v604 = vld [vmem:[#allocation10 + $0x98] sm:$0xff]
    %v605 = vld [vmem:[#allocation10 + $0xa0] sm:$0xff]
    %v606 = vld [vmem:[#allocation10 + $0xa8] sm:$0xff]
    %v607 = vld [vmem:[#allocation10 + $0xb0] sm:$0xff]
    %v608 = vld [vmem:[#allocation10 + $0xb8] sm:$0xff]
    %v609 = vld [vmem:[#allocation10 + $0xc0] sm:$0xff]
    %v610 = vld [vmem:[#allocation10 + $0xc8] sm:$0xff]
    %v611 = vld [vmem:[#allocation10 + $0xd0] sm:$0xff]
    %v612 = vld [vmem:[#allocation10 + $0xd8] sm:$0xff]
    %v613 = vld [vmem:[#allocation10 + $0xe0] sm:$0xff]
    %v614 = vld [vmem:[#allocation10 + $0xe8] sm:$0xff]
    %v615 = vld [vmem:[#allocation10 + $0xf0] sm:$0xff]
    %v616 = vld [vmem:[#allocation10 + $0xf8] sm:$0xff]
    %v617 = vld [vmem:[#allocation10 + $0x100] sm:$0xff]
    %v618 = vld [vmem:[#allocation10 + $0x108] sm:$0xff]
    %v619 = vld [vmem:[#allocation10 + $0x110] sm:$0xff]
    %v620 = vld [vmem:[#allocation10 + $0x118] sm:$0xff]
    %v621 = vld [vmem:[#allocation10 + $0x120] sm:$0xff]
    %v622 = vld [vmem:[#allocation10 + $0x128] sm:$0xff]
    %v623 = vld [vmem:[#allocation10 + $0x130] sm:$0xff]
    %v624 = vld [vmem:[#allocation10 + $0x138] sm:$0xff]
    %v625 = vld [vmem:[#allocation10 + $0x140] sm:$0xff]
    %v626 = vld [vmem:[#allocation10 + $0x148] sm:$0xff]
    %v627 = vld [vmem:[#allocation10 + $0x150] sm:$0xff]
    %v628 = vld [vmem:[#allocation10 + $0x158] sm:$0xff]
    %v629 = vld [vmem:[#allocation10 + $0x160] sm:$0xff]
    %v630 = vld [vmem:[#allocation10 + $0x168] sm:$0xff]
    %v631 = vld [vmem:[#allocation10 + $0x170] sm:$0xff]
    %v632 = vld [vmem:[#allocation10 + $0x178] sm:$0xff]
    %v633 = vld [vmem:[#allocation10 + $0x180] sm:$0xff]
    %v634 = vld [vmem:[#allocation10 + $0x188] sm:$0xff]
    %v635 = vld [vmem:[#allocation10 + $0x190] sm:$0xff]
    %v636 = vld [vmem:[#allocation10 + $0x198] sm:$0xff]
    %v637 = vld [vmem:[#allocation10 + $0x1a0] sm:$0xff]
    %v638 = vld [vmem:[#allocation10 + $0x1a8] sm:$0xff]
    %v639 = vld [vmem:[#allocation10 + $0x1b0] sm:$0xff]
    %v640 = vld [vmem:[#allocation10 + $0x1b8] sm:$0xff]
    %v641 = vld [vmem:[#allocation10 + $0x1c0] sm:$0xff]
    %v642 = vld [vmem:[#allocation10 + $0x1c8] sm:$0xff]
    %v643 = vld [vmem:[#allocation10 + $0x1d0] sm:$0xff]
    %v644 = vld [vmem:[#allocation10 + $0x1d8] sm:$0xff]
    %v645 = vld [vmem:[#allocation10 + $0x1e0] sm:$0xff]
    %v646 = vld [vmem:[#allocation10 + $0x1e8] sm:$0xff]
    %v647 = vld [vmem:[#allocation10 + $0x1f0] sm:$0xff]
    %v648 = vld [vmem:[#allocation10 + $0x1f8] sm:$0xff]
    %v649 = vld [vmem:[#allocation10 + $0x200] sm:$0xff]
    %v650 = vld [vmem:[#allocation10 + $0x208] sm:$0xff]
    %v651 = vld [vmem:[#allocation10 + $0x210] sm:$0xff]
    %v652 = vld [vmem:[#allocation10 + $0x218] sm:$0xff]
    %v653 = vld [vmem:[#allocation10 + $0x220] sm:$0xff]
    %v654 = vld [vmem:[#allocation10 + $0x228] sm:$0xff]
    %v655 = vld [vmem:[#allocation10 + $0x230] sm:$0xff]
    %v656 = vld [vmem:[#allocation10 + $0x238] sm:$0xff]
    %v657 = vld [vmem:[#allocation10 + $0x240] sm:$0xff]
    %v658 = vld [vmem:[#allocation10 + $0x248] sm:$0xff]
    %v659 = vld [vmem:[#allocation10 + $0x250] sm:$0xff]
    %v660 = vld [vmem:[#allocation10 + $0x258] sm:$0xff]
    %v661 = vld [vmem:[#allocation10 + $0x260] sm:$0xff]
    %v662 = vld [vmem:[#allocation10 + $0x268] sm:$0xff]
    %v663 = vld [vmem:[#allocation10 + $0x270] sm:$0xff]
    %v664 = vld [vmem:[#allocation10 + $0x278] sm:$0xff]
    %v665 = vld [vmem:[#allocation10 + $0x280] sm:$0xff]
    %v666 = vld [vmem:[#allocation10 + $0x288] sm:$0xff]
    %v667 = vld [vmem:[#allocation10 + $0x290] sm:$0xff]
    %v668 = vld [vmem:[#allocation10 + $0x298] sm:$0xff]
    %v669 = vld [vmem:[#allocation10 + $0x2a0] sm:$0xff]
    %v670 = vld [vmem:[#allocation10 + $0x2a8] sm:$0xff]
    %v671 = vld [vmem:[#allocation10 + $0x2b0] sm:$0xff]
    %v672 = vld [vmem:[#allocation10 + $0x2b8] sm:$0xff]
    %v673 = vld [vmem:[#allocation10 + $0x2c0] sm:$0xff]
    %v674 = vld [vmem:[#allocation10 + $0x2c8] sm:$0xff]
    %v675 = vld [vmem:[#allocation10 + $0x2d0] sm:$0xff]
    %v676 = vld [vmem:[#allocation10 + $0x2d8] sm:$0xff]
    %v677 = vld [vmem:[#allocation10 + $0x2e0] sm:$0xff]
    %v678 = vld [vmem:[#allocation10 + $0x2e8] sm:$0xff]
    %v679 = vld [vmem:[#allocation10 + $0x2f0] sm:$0xff]
    %v680 = vld [vmem:[#allocation10 + $0x2f8] sm:$0xff]
    %v681 = vld [vmem:[#allocation10 + $0x300] sm:$0xff]
    %v682 = vld [vmem:[#allocation10 + $0x308] sm:$0xff]
    %v683 = vld [vmem:[#allocation10 + $0x310] sm:$0xff]
    %v684 = vld [vmem:[#allocation10 + $0x318] sm:$0xff]
    %v685 = vld [vmem:[#allocation10 + $0x320] sm:$0xff]
    %v686 = vld [vmem:[#allocation10 + $0x328] sm:$0xff]
    %v687 = vld [vmem:[#allocation10 + $0x330] sm:$0xff]
    %v688 = vld [vmem:[#allocation10 + $0x338] sm:$0xff]
    %v689 = vld [vmem:[#allocation10 + $0x340] sm:$0xff]
    %v690 = vld [vmem:[#allocation10 + $0x348] sm:$0xff]
    %v691 = vld [vmem:[#allocation10 + $0x350] sm:$0xff]
    %v692 = vld [vmem:[#allocation10 + $0x358] sm:$0xff]
    %v693 = vld [vmem:[#allocation10 + $0x360] sm:$0xff]
    %v694 = vld [vmem:[#allocation10 + $0x368] sm:$0xff]
    %v695 = vld [vmem:[#allocation10 + $0x370] sm:$0xff]
    %v696 = vld [vmem:[#allocation10 + $0x378] sm:$0xff]
    %v697 = vld [vmem:[#allocation10 + $0x380] sm:$0xff]
    %v698 = vld [vmem:[#allocation10 + $0x388] sm:$0xff]
    %v699 = vld [vmem:[#allocation10 + $0x390] sm:$0xff]
    %v700 = vld [vmem:[#allocation10 + $0x398] sm:$0xff]
    %v701 = vld [vmem:[#allocation10 + $0x3a0] sm:$0xff]
    %v702 = vld [vmem:[#allocation10 + $0x3a8] sm:$0xff]
    %v703 = vld [vmem:[#allocation10 + $0x3b0] sm:$0xff]
    %v704 = vld [vmem:[#allocation10 + $0x3b8] sm:$0xff]
    %v705 = vld [vmem:[#allocation10 + $0x3c0] sm:$0xff]
    %v706 = vld [vmem:[#allocation10 + $0x3c8] sm:$0xff]
    %v707 = vld [vmem:[#allocation10 + $0x3d0] sm:$0xff]
    %v708 = vld [vmem:[#allocation10 + $0x3d8] sm:$0xff]
    %v709 = vld [vmem:[#allocation10 + $0x3e0] sm:$0xff]
    %v710 = vld [vmem:[#allocation10 + $0x3e8] sm:$0xff]
    %v711 = vld [vmem:[#allocation10 + $0x3f0] sm:$0xff]
    %v712 = vld [vmem:[#allocation10 + $0x3f8] sm:$0xff]
    %v713 = vld [vmem:[#allocation10 + $0x400] sm:$0xff]
    %v714 = vld [vmem:[#allocation10 + $0x408] sm:$0xff]
    %v715 = vld [vmem:[#allocation10 + $0x410] sm:$0xff]
    %v716 = vld [vmem:[#allocation10 + $0x418] sm:$0xff]
    %v717 = vld [vmem:[#allocation10 + $0x420] sm:$0xff]
    %v718 = vld [vmem:[#allocation10 + $0x428] sm:$0xff]
    %v719 = vld [vmem:[#allocation10 + $0x430] sm:$0xff]
    %v720 = vld [vmem:[#allocation10 + $0x438] sm:$0xff]
    %v721 = vld [vmem:[#allocation10 + $0x440] sm:$0xff]
    %v722 = vld [vmem:[#allocation10 + $0x448] sm:$0xff]
    %v723 = vld [vmem:[#allocation10 + $0x450] sm:$0xff]
    %v724 = vld [vmem:[#allocation10 + $0x458] sm:$0xff]
    %v725 = vld [vmem:[#allocation10 + $0x460] sm:$0xff]
    %v726 = vld [vmem:[#allocation10 + $0x468] sm:$0xff]
    %v727 = vld [vmem:[#allocation10 + $0x470] sm:$0xff]
    %v728 = vld [vmem:[#allocation10 + $0x478] sm:$0xff]
    %v729 = vld [vmem:[#allocation10 + $0x480] sm:$0xff]
    %v730 = vld [vmem:[#allocation10 + $0x488] sm:$0xff]
    %v731 = vld [vmem:[#allocation10 + $0x490] sm:$0xff]
    %v732 = vld [vmem:[#allocation10 + $0x498] sm:$0xff]
    %v733 = vld [vmem:[#allocation10 + $0x4a0] sm:$0xff]
    %v734 = vld [vmem:[#allocation10 + $0x4a8] sm:$0xff]
    %v735 = vld [vmem:[#allocation10 + $0x4b0] sm:$0xff]
    %v736 = vld [vmem:[#allocation10 + $0x4b8] sm:$0xff]
    %v737 = vld [vmem:[#allocation10 + $0x4c0] sm:$0xff]
    %v738 = vld [vmem:[#allocation10 + $0x4c8] sm:$0xff]
    %v739 = vld [vmem:[#allocation10 + $0x4d0] sm:$0xff]
    %v740 = vld [vmem:[#allocation10 + $0x4d8] sm:$0xff]
    %v741 = vld [vmem:[#allocation10 + $0x4e0] sm:$0xff]
    %v742 = vld [vmem:[#allocation10 + $0x4e8] sm:$0xff]
    %v743 = vld [vmem:[#allocation10 + $0x4f0] sm:$0xff]
    %v744 = vld [vmem:[#allocation10 + $0x4f8] sm:$0xff]
    %v745 = vld [vmem:[#allocation10 + $0x500] sm:$0xff]
    %v746 = vld [vmem:[#allocation10 + $0x508] sm:$0xff]
    %v747 = vld [vmem:[#allocation10 + $0x510] sm:$0xff]
    %v748 = vld [vmem:[#allocation10 + $0x518] sm:$0xff]
    %v749 = vld [vmem:[#allocation10 + $0x520] sm:$0xff]
    %v750 = vld [vmem:[#allocation10 + $0x528] sm:$0xff]
    %v751 = vld [vmem:[#allocation10 + $0x530] sm:$0xff]
    %v752 = vld [vmem:[#allocation10 + $0x538] sm:$0xff]
    %v753 = vld [vmem:[#allocation10 + $0x540] sm:$0xff]
    %v754 = vld [vmem:[#allocation10 + $0x548] sm:$0xff]
    %v755 = vld [vmem:[#allocation10 + $0x550] sm:$0xff]
    %v756 = vld [vmem:[#allocation10 + $0x558] sm:$0xff]
    %v757 = vld [vmem:[#allocation10 + $0x560] sm:$0xff]
    %v758 = vld [vmem:[#allocation10 + $0x568] sm:$0xff]
    %v759 = vld [vmem:[#allocation10 + $0x570] sm:$0xff]
    %v760 = vld [vmem:[#allocation10 + $0x578] sm:$0xff]
    %v761 = vld [vmem:[#allocation10 + $0x580] sm:$0xff]
    %v762 = vld [vmem:[#allocation10 + $0x588] sm:$0xff]
    %v763 = vld [vmem:[#allocation10 + $0x590] sm:$0xff]
    %v764 = vld [vmem:[#allocation10 + $0x598] sm:$0xff]
    %v765 = vld [vmem:[#allocation10 + $0x5a0] sm:$0xff]
    %v766 = vld [vmem:[#allocation10 + $0x5a8] sm:$0xff]
    %v767 = vld [vmem:[#allocation10 + $0x5b0] sm:$0xff]
    %v768 = vld [vmem:[#allocation10 + $0x5b8] sm:$0xff]
    %v769 = vld [vmem:[#allocation10 + $0x5c0] sm:$0xff]
    %v770 = vld [vmem:[#allocation10 + $0x5c8] sm:$0xff]
    %v771 = vld [vmem:[#allocation10 + $0x5d0] sm:$0xff]
    %v772 = vld [vmem:[#allocation10 + $0x5d8] sm:$0xff]
    %v773 = vld [vmem:[#allocation10 + $0x5e0] sm:$0xff]
    %v774 = vld [vmem:[#allocation10 + $0x5e8] sm:$0xff]
    %v775 = vld [vmem:[#allocation10 + $0x5f0] sm:$0xff]
    %v776 = vld [vmem:[#allocation10 + $0x5f8] sm:$0xff]
    %v777 = vld [vmem:[#allocation10 + $0x600] sm:$0xff]
    %v778 = vld [vmem:[#allocation10 + $0x608] sm:$0xff]
    %v779 = vld [vmem:[#allocation10 + $0x610] sm:$0xff]
    %v780 = vld [vmem:[#allocation10 + $0x618] sm:$0xff]
    %v781 = vld [vmem:[#allocation10 + $0x620] sm:$0xff]
    %v782 = vld [vmem:[#allocation10 + $0x628] sm:$0xff]
    %v783 = vld [vmem:[#allocation10 + $0x630] sm:$0xff]
    %v784 = vld [vmem:[#allocation10 + $0x638] sm:$0xff]
    %v785 = vld [vmem:[#allocation10 + $0x640] sm:$0xff]
    %v786 = vld [vmem:[#allocation10 + $0x648] sm:$0xff]
    %v787 = vld [vmem:[#allocation10 + $0x650] sm:$0xff]
    %v788 = vld [vmem:[#allocation10 + $0x658] sm:$0xff]
    %v789 = vld [vmem:[#allocation10 + $0x660] sm:$0xff]
    %v790 = vld [vmem:[#allocation10 + $0x668] sm:$0xff]
    %v791 = vld [vmem:[#allocation10 + $0x670] sm:$0xff]
    %v792 = vld [vmem:[#allocation10 + $0x678] sm:$0xff]
    %v793 = vld [vmem:[#allocation10 + $0x680] sm:$0xff]
    %v794 = vld [vmem:[#allocation10 + $0x688] sm:$0xff]
    %v795 = vld [vmem:[#allocation10 + $0x690] sm:$0xff]
    %v796 = vld [vmem:[#allocation10 + $0x698] sm:$0xff]
    %v797 = vld [vmem:[#allocation10 + $0x6a0] sm:$0xff]
    %v798 = vld [vmem:[#allocation10 + $0x6a8] sm:$0xff]
    %v799 = vld [vmem:[#allocation10 + $0x6b0] sm:$0xff]
    %v800 = vld [vmem:[#allocation10 + $0x6b8] sm:$0xff]
    %v801 = vld [vmem:[#allocation10 + $0x6c0] sm:$0xff]
    %v802 = vld [vmem:[#allocation10 + $0x6c8] sm:$0xff]
    %v803 = vld [vmem:[#allocation10 + $0x6d0] sm:$0xff]
    %v804 = vld [vmem:[#allocation10 + $0x6d8] sm:$0xff]
    %v805 = vld [vmem:[#allocation10 + $0x6e0] sm:$0xff]
    %v806 = vld [vmem:[#allocation10 + $0x6e8] sm:$0xff]
    %v807 = vld [vmem:[#allocation10 + $0x6f0] sm:$0xff]
    %v808 = vld [vmem:[#allocation10 + $0x6f8] sm:$0xff]
    %v809 = vld [vmem:[#allocation10 + $0x700] sm:$0xff]
    %v810 = vld [vmem:[#allocation10 + $0x708] sm:$0xff]
    %v811 = vld [vmem:[#allocation10 + $0x710] sm:$0xff]
    %v812 = vld [vmem:[#allocation10 + $0x718] sm:$0xff]
    %v813 = vld [vmem:[#allocation10 + $0x720] sm:$0xff]
    %v814 = vld [vmem:[#allocation10 + $0x728] sm:$0xff]
    %v815 = vld [vmem:[#allocation10 + $0x730] sm:$0xff]
    %v816 = vld [vmem:[#allocation10 + $0x738] sm:$0xff]
    %v817 = vld [vmem:[#allocation10 + $0x740] sm:$0xff]
    %v818 = vld [vmem:[#allocation10 + $0x748] sm:$0xff]
    %v819 = vld [vmem:[#allocation10 + $0x750] sm:$0xff]
    %v820 = vld [vmem:[#allocation10 + $0x758] sm:$0xff]
    %v821 = vld [vmem:[#allocation10 + $0x760] sm:$0xff]
    %v822 = vld [vmem:[#allocation10 + $0x768] sm:$0xff]
    %v823 = vld [vmem:[#allocation10 + $0x770] sm:$0xff]
    %v824 = vld [vmem:[#allocation10 + $0x778] sm:$0xff]
    %v825 = vld [vmem:[#allocation10 + $0x780] sm:$0xff]
    %v826 = vld [vmem:[#allocation10 + $0x788] sm:$0xff]
    %v827 = vld [vmem:[#allocation10 + $0x790] sm:$0xff]
    %v828 = vld [vmem:[#allocation10 + $0x798] sm:$0xff]
    %v829 = vld [vmem:[#allocation10 + $0x7a0] sm:$0xff]
    %v830 = vld [vmem:[#allocation10 + $0x7a8] sm:$0xff]
    %v831 = vld [vmem:[#allocation10 + $0x7b0] sm:$0xff]
    %v832 = vld [vmem:[#allocation10 + $0x7b8] sm:$0xff]
    %v833 = vld [vmem:[#allocation10 + $0x7c0] sm:$0xff]
    %v834 = vld [vmem:[#allocation10 + $0x7c8] sm:$0xff]
    %v835 = vld [vmem:[#allocation10 + $0x7d0] sm:$0xff]
    %v836 = vld [vmem:[#allocation10 + $0x7d8] sm:$0xff]
    %v837 = vld [vmem:[#allocation10 + $0x7e0] sm:$0xff]
    %v838 = vld [vmem:[#allocation10 + $0x7e8] sm:$0xff]
    %v839 = vld [vmem:[#allocation10 + $0x7f0] sm:$0xff]
    %v840 = vld [vmem:[#allocation10 + $0x7f8] sm:$0xff]
    %v841 = vld [vmem:[#allocation10 + $0x800] sm:$0xff]
    %v842 = vld [vmem:[#allocation10 + $0x808] sm:$0xff]
    %v843 = vld [vmem:[#allocation10 + $0x810] sm:$0xff]
    %v844 = vld [vmem:[#allocation10 + $0x818] sm:$0xff]
    %v845 = vld [vmem:[#allocation10 + $0x820] sm:$0xff]
    %v846 = vld [vmem:[#allocation10 + $0x828] sm:$0xff]
    %v847 = vld [vmem:[#allocation10 + $0x830] sm:$0xff]
    %v848 = vld [vmem:[#allocation10 + $0x838] sm:$0xff]
    %v849 = vld [vmem:[#allocation10 + $0x840] sm:$0xff]
    %v850 = vld [vmem:[#allocation10 + $0x848] sm:$0xff]
    %v851 = vld [vmem:[#allocation10 + $0x850] sm:$0xff]
    %v852 = vld [vmem:[#allocation10 + $0x858] sm:$0xff]
    %v853 = vld [vmem:[#allocation10 + $0x860] sm:$0xff]
    %v854 = vld [vmem:[#allocation10 + $0x868] sm:$0xff]
    %v855 = vld [vmem:[#allocation10 + $0x870] sm:$0xff]
    %v856 = vld [vmem:[#allocation10 + $0x878] sm:$0xff]
    %v857 = vld [vmem:[#allocation10 + $0x880] sm:$0xff]
    %v858 = vld [vmem:[#allocation10 + $0x888] sm:$0xff]
    %v859 = vld [vmem:[#allocation10 + $0x890] sm:$0xff]
    %v860 = vld [vmem:[#allocation10 + $0x898] sm:$0xff]
    %v861 = vld [vmem:[#allocation10 + $0x8a0] sm:$0xff]
    %v862 = vld [vmem:[#allocation10 + $0x8a8] sm:$0xff]
    %v863 = vld [vmem:[#allocation10 + $0x8b0] sm:$0xff]
    %v864 = vld [vmem:[#allocation10 + $0x8b8] sm:$0xff]
    %v865 = vld [vmem:[#allocation10 + $0x8c0] sm:$0xff]
    %v866 = vld [vmem:[#allocation10 + $0x8c8] sm:$0xff]
    %v867 = vld [vmem:[#allocation10 + $0x8d0] sm:$0xff]
    %v868 = vld [vmem:[#allocation10 + $0x8d8] sm:$0xff]
    %v869 = vld [vmem:[#allocation10 + $0x8e0] sm:$0xff]
    %v870 = vld [vmem:[#allocation10 + $0x8e8] sm:$0xff]
    %v871 = vld [vmem:[#allocation10 + $0x8f0] sm:$0xff]
    %v872 = vld [vmem:[#allocation10 + $0x8f8] sm:$0xff]
    %v873 = vld [vmem:[#allocation10 + $0x900] sm:$0xff]
    %v874 = vld [vmem:[#allocation10 + $0x908] sm:$0xff]
    %v875 = vld [vmem:[#allocation10 + $0x910] sm:$0xff]
    %v876 = vld [vmem:[#allocation10 + $0x918] sm:$0xff]
    %v877 = vld [vmem:[#allocation10 + $0x920] sm:$0xff]
    %v878 = vld [vmem:[#allocation10 + $0x928] sm:$0xff]
    %v879 = vld [vmem:[#allocation10 + $0x930] sm:$0xff]
    %v880 = vld [vmem:[#allocation10 + $0x938] sm:$0xff]
    %v881 = vld [vmem:[#allocation10 + $0x940] sm:$0xff]
    %v882 = vld [vmem:[#allocation10 + $0x948] sm:$0xff]
    %v883 = vld [vmem:[#allocation10 + $0x950] sm:$0xff]
    %v884 = vld [vmem:[#allocation10 + $0x958] sm:$0xff]
    %v885 = vld [vmem:[#allocation10 + $0x960] sm:$0xff]
    %v886 = vld [vmem:[#allocation10 + $0x968] sm:$0xff]
    %v887 = vld [vmem:[#allocation10 + $0x970] sm:$0xff]
    %v888 = vld [vmem:[#allocation10 + $0x978] sm:$0xff]
    %v889 = vld [vmem:[#allocation10 + $0x980] sm:$0xff]
    %v890 = vld [vmem:[#allocation10 + $0x988] sm:$0xff]
    %v891 = vld [vmem:[#allocation10 + $0x990] sm:$0xff]
    %v892 = vld [vmem:[#allocation10 + $0x998] sm:$0xff]
    %v893 = vld [vmem:[#allocation10 + $0x9a0] sm:$0xff]
    %v894 = vld [vmem:[#allocation10 + $0x9a8] sm:$0xff]
    %v895 = vld [vmem:[#allocation10 + $0x9b0] sm:$0xff]
    %v896 = vld [vmem:[#allocation10 + $0x9b8] sm:$0xff]
    %v897 = vld [vmem:[#allocation10 + $0x9c0] sm:$0xff]
    %v898 = vld [vmem:[#allocation10 + $0x9c8] sm:$0xff]
    %v899 = vld [vmem:[#allocation10 + $0x9d0] sm:$0xff]
    %v900 = vld [vmem:[#allocation10 + $0x9d8] sm:$0xff]
    %v901 = vld [vmem:[#allocation10 + $0x9e0] sm:$0xff]
    %v902 = vld [vmem:[#allocation10 + $0x9e8] sm:$0xff]
    %v903 = vld [vmem:[#allocation10 + $0x9f0] sm:$0xff]
    %v904 = vld [vmem:[#allocation10 + $0x9f8] sm:$0xff]
    %v905 = vld [vmem:[#allocation10 + $0xa00] sm:$0xff]
    %v906 = vld [vmem:[#allocation10 + $0xa08] sm:$0xff]
    %v907 = vld [vmem:[#allocation10 + $0xa10] sm:$0xff]
    %v908 = vld [vmem:[#allocation10 + $0xa18] sm:$0xff]
    %v909 = vld [vmem:[#allocation10 + $0xa20] sm:$0xff]
    %v910 = vld [vmem:[#allocation10 + $0xa28] sm:$0xff]
    %v911 = vld [vmem:[#allocation10 + $0xa30] sm:$0xff]
    %v912 = vld [vmem:[#allocation10 + $0xa38] sm:$0xff]
    %v913 = vld [vmem:[#allocation10 + $0xa40] sm:$0xff]
    %v914 = vld [vmem:[#allocation10 + $0xa48] sm:$0xff]
    %v915 = vld [vmem:[#allocation10 + $0xa50] sm:$0xff]
    %v916 = vld [vmem:[#allocation10 + $0xa58] sm:$0xff]
    %v917 = vld [vmem:[#allocation10 + $0xa60] sm:$0xff]
    %v918 = vld [vmem:[#allocation10 + $0xa68] sm:$0xff]
    %v919 = vld [vmem:[#allocation10 + $0xa70] sm:$0xff]
    %v920 = vld [vmem:[#allocation10 + $0xa78] sm:$0xff]
    %v921 = vld [vmem:[#allocation10 + $0xa80] sm:$0xff]
    %v922 = vld [vmem:[#allocation10 + $0xa88] sm:$0xff]
    %v923 = vld [vmem:[#allocation10 + $0xa90] sm:$0xff]
    %v924 = vld [vmem:[#allocation10 + $0xa98] sm:$0xff]
    %v925 = vld [vmem:[#allocation10 + $0xaa0] sm:$0xff]
    %v926 = vld [vmem:[#allocation10 + $0xaa8] sm:$0xff]
    %v927 = vld [vmem:[#allocation10 + $0xab0] sm:$0xff]
    %v928 = vld [vmem:[#allocation10 + $0xab8] sm:$0xff]
    %v929 = vld [vmem:[#allocation10 + $0xac0] sm:$0xff]
    %v930 = vld [vmem:[#allocation10 + $0xac8] sm:$0xff]
    %v931 = vld [vmem:[#allocation10 + $0xad0] sm:$0xff]
    %v932 = vld [vmem:[#allocation10 + $0xad8] sm:$0xff]
    %v933 = vld [vmem:[#allocation10 + $0xae0] sm:$0xff]
    %v934 = vld [vmem:[#allocation10 + $0xae8] sm:$0xff]
    %v935 = vld [vmem:[#allocation10 + $0xaf0] sm:$0xff]
    %v936 = vld [vmem:[#allocation10 + $0xaf8] sm:$0xff]
    %v937 = vld [vmem:[#allocation10 + $0xb00] sm:$0xff]
    %v938 = vld [vmem:[#allocation10 + $0xb08] sm:$0xff]
    %v939 = vld [vmem:[#allocation10 + $0xb10] sm:$0xff]
    %v940 = vld [vmem:[#allocation10 + $0xb18] sm:$0xff]
    %v941 = vld [vmem:[#allocation10 + $0xb20] sm:$0xff]
    %v942 = vld [vmem:[#allocation10 + $0xb28] sm:$0xff]
    %v943 = vld [vmem:[#allocation10 + $0xb30] sm:$0xff]
    %v944 = vld [vmem:[#allocation10 + $0xb38] sm:$0xff]
    %v945 = vld [vmem:[#allocation10 + $0xb40] sm:$0xff]
    %v946 = vld [vmem:[#allocation10 + $0xb48] sm:$0xff]
    %v947 = vld [vmem:[#allocation10 + $0xb50] sm:$0xff]
    %v948 = vld [vmem:[#allocation10 + $0xb58] sm:$0xff]
    %v949 = vld [vmem:[#allocation10 + $0xb60] sm:$0xff]
    %v950 = vld [vmem:[#allocation10 + $0xb68] sm:$0xff]
    %v951 = vld [vmem:[#allocation10 + $0xb70] sm:$0xff]
    %v952 = vld [vmem:[#allocation10 + $0xb78] sm:$0xff]
    %v953 = vld [vmem:[#allocation10 + $0xb80] sm:$0xff]
    %v954 = vld [vmem:[#allocation10 + $0xb88] sm:$0xff]
    %v955 = vld [vmem:[#allocation10 + $0xb90] sm:$0xff]
    %v956 = vld [vmem:[#allocation10 + $0xb98] sm:$0xff]
    %v957 = vld [vmem:[#allocation10 + $0xba0] sm:$0xff]
    %v958 = vld [vmem:[#allocation10 + $0xba8] sm:$0xff]
    %v959 = vld [vmem:[#allocation10 + $0xbb0] sm:$0xff]
    %v960 = vld [vmem:[#allocation10 + $0xbb8] sm:$0xff]
    %v961 = vld [vmem:[#allocation10 + $0xbc0] sm:$0xff]
    %v962 = vld [vmem:[#allocation10 + $0xbc8] sm:$0xff]
    %v963 = vld [vmem:[#allocation10 + $0xbd0] sm:$0xff]
    %v964 = vld [vmem:[#allocation10 + $0xbd8] sm:$0xff]
    %v965 = vld [vmem:[#allocation10 + $0xbe0] sm:$0xff]
    %v966 = vld [vmem:[#allocation10 + $0xbe8] sm:$0xff]
    %v967 = vld [vmem:[#allocation10 + $0xbf0] sm:$0xff]
    %v968 = vld [vmem:[#allocation10 + $0xbf8] sm:$0xff]
    %v969 = vld [vmem:[#allocation11] sm:$0xf]
    %v971 = vperm.slane %v969, 0
    %v972 = vperm.slane %v969, 1
    %v973 = vperm.slane %v969, 2
    %v974 = vperm.slane %v969, 3
    %987 = vst [vmem:[#allocation1] ss:$4 sm:$0xff] %v118
    %s988 = scalar_lea.vmem [#allocation1], 1
    %989 = vst [vmem:[%s988] ss:$4 sm:$0xff] %v120
    %s990 = scalar_lea.vmem [#allocation1], 2
    %991 = vst [vmem:[%s990] ss:$4 sm:$0xff] %v122
    %s992 = scalar_lea.vmem [#allocation1], 3
    %993 = vst [vmem:[%s992] ss:$4 sm:$0xff] %v124
    %s994 = scalar_lea.vmem [#allocation1], 32
    %995 = vst [vmem:[%s994] ss:$4 sm:$0xff] %v119
    %s996 = scalar_lea.vmem [#allocation1], 33
    %997 = vst [vmem:[%s996] ss:$4 sm:$0xff] %v121
    %s998 = scalar_lea.vmem [#allocation1], 34
    %999 = vst [vmem:[%s998] ss:$4 sm:$0xff] %v123
    %s1000 = scalar_lea.vmem [#allocation1], 35
    %1001 = vst [vmem:[%s1000] ss:$4 sm:$0xff] %v125
    %v1002 = vld.sshfl [vmem:[#allocation1] sm:$0xff pattern:$0x73625140]
    %v1003 = vld.sshfl [vmem:[#allocation1 + $0x8] sm:$0xff pattern:$0x73625140]
    %v1004 = vld.sshfl [vmem:[#allocation1 + $0x10] sm:$0xff pattern:$0x73625140]
    %v1005 = vld.sshfl [vmem:[#allocation1 + $0x18] sm:$0xff pattern:$0x73625140]
    %v1006 = vld.sshfl [vmem:[#allocation1 + $0x20] sm:$0xff pattern:$0x73625140]
    %v1007 = vld.sshfl [vmem:[#allocation1 + $0x28] sm:$0xff pattern:$0x73625140]
    %1014 = vmatpush.msra.mxu0 %v645
    %1015 = vmatpush.msra.mxu0 %v641
    %1016 = vmatpush.msra.mxu0 %v637
    %1017 = vmatpush.msra.mxu0 %v633
    %1018 = vmatpush.msra.mxu0 %v629
    %1019 = vmatpush.msra.mxu0 %v625
    %1020 = vmatpush.msra.mxu0 %v621
    %1021 = vmatpush.msra.mxu0 %v617
    %1022 = vmatpush.msra.mxu0 %v613
    %1023 = vmatpush.msra.mxu0 %v609
    %1024 = vmatpush.msra.mxu0 %v605
    %1025 = vmatpush.msra.mxu0 %v601
    %1026 = vmatpush.msra.mxu0 %v597
    %1027 = vmatpush.msra.mxu0 %v593
    %1028 = vmatpush.msra.mxu0 %v589
    %1029 = vmatpush.msra.mxu0 %v585
    %1030 = vmatmul.f32.gmra.mxu0 %v1002
    %v1031 = vpop.f32.mrf.mxu0
    %v1032 = vadd.f32 %v971, %v1031
    %1033 = vdwg.mxu0
    %1034 = vmatpush.msra.mxu0 %v709
    %1035 = vmatpush.msra.mxu0 %v705
    %1036 = vmatpush.msra.mxu0 %v701
    %1037 = vmatpush.msra.mxu0 %v697
    %1038 = vmatpush.msra.mxu0 %v693
    %1039 = vmatpush.msra.mxu0 %v689
    %1040 = vmatpush.msra.mxu0 %v685
    %1041 = vmatpush.msra.mxu0 %v681
    %1042 = vmatpush.msra.mxu0 %v677
    %1043 = vmatpush.msra.mxu0 %v673
    %1044 = vmatpush.msra.mxu0 %v669
    %1045 = vmatpush.msra.mxu0 %v665
    %1046 = vmatpush.msra.mxu0 %v661
    %1047 = vmatpush.msra.mxu0 %v657
    %1048 = vmatpush.msra.mxu0 %v653
    %1049 = vmatpush.msra.mxu0 %v649
    %1050 = vmatmul.f32.gmra.mxu0 %v1003
    %v1051 = vpop.f32.mrf.mxu0
    %v1052 = vadd.f32 %v1032, %v1051
    %1053 = vdwg.mxu0
    %1054 = vmatpush.msra.mxu0 %v773
    %1055 = vmatpush.msra.mxu0 %v769
    %1056 = vmatpush.msra.mxu0 %v765
    %1057 = vmatpush.msra.mxu0 %v761
    %1058 = vmatpush.msra.mxu0 %v757
    %1059 = vmatpush.msra.mxu0 %v753
    %1060 = vmatpush.msra.mxu0 %v749
    %1061 = vmatpush.msra.mxu0 %v745
    %1062 = vmatpush.msra.mxu0 %v741
    %1063 = vmatpush.msra.mxu0 %v737
    %1064 = vmatpush.msra.mxu0 %v733
    %1065 = vmatpush.msra.mxu0 %v729
    %1066 = vmatpush.msra.mxu0 %v725
    %1067 = vmatpush.msra.mxu0 %v721
    %1068 = vmatpush.msra.mxu0 %v717
    %1069 = vmatpush.msra.mxu0 %v713
    %1070 = vmatmul.f32.gmra.mxu0 %v1004
    %v1071 = vpop.f32.mrf.mxu0
    %v1072 = vadd.f32 %v1052, %v1071
    %1073 = vdwg.mxu0
    %1074 = vmatpush.msra.mxu0 %v837
    %1075 = vmatpush.msra.mxu0 %v833
    %1076 = vmatpush.msra.mxu0 %v829
    %1077 = vmatpush.msra.mxu0 %v825
    %1078 = vmatpush.msra.mxu0 %v821
    %1079 = vmatpush.msra.mxu0 %v817
    %1080 = vmatpush.msra.mxu0 %v813
    %1081 = vmatpush.msra.mxu0 %v809
    %1082 = vmatpush.msra.mxu0 %v805
    %1083 = vmatpush.msra.mxu0 %v801
    %1084 = vmatpush.msra.mxu0 %v797
    %1085 = vmatpush.msra.mxu0 %v793
    %1086 = vmatpush.msra.mxu0 %v789
    %1087 = vmatpush.msra.mxu0 %v785
    %1088 = vmatpush.msra.mxu0 %v781
    %1089 = vmatpush.msra.mxu0 %v777
    %1090 = vmatmul.f32.gmra.mxu0 %v1005
    %v1091 = vpop.f32.mrf.mxu0
    %v1092 = vadd.f32 %v1072, %v1091
    %1093 = vdwg.mxu0
    %1094 = vmatpush.msra.mxu0 %v901
    %1095 = vmatpush.msra.mxu0 %v897
    %1096 = vmatpush.msra.mxu0 %v893
    %1097 = vmatpush.msra.mxu0 %v889
    %1098 = vmatpush.msra.mxu0 %v885
    %1099 = vmatpush.msra.mxu0 %v881
    %1100 = vmatpush.msra.mxu0 %v877
    %1101 = vmatpush.msra.mxu0 %v873
    %1102 = vmatpush.msra.mxu0 %v869
    %1103 = vmatpush.msra.mxu0 %v865
    %1104 = vmatpush.msra.mxu0 %v861
    %1105 = vmatpush.msra.mxu0 %v857
    %1106 = vmatpush.msra.mxu0 %v853
    %1107 = vmatpush.msra.mxu0 %v849
    %1108 = vmatpush.msra.mxu0 %v845
    %1109 = vmatpush.msra.mxu0 %v841
    %1110 = vmatmul.f32.gmra.mxu0 %v1006
    %v1111 = vpop.f32.mrf.mxu0
    %v1112 = vadd.f32 %v1092, %v1111
    %1113 = vdwg.mxu0
    %1114 = vmatpush.msra.mxu0 %v965
    %1115 = vmatpush.msra.mxu0 %v961
    %1116 = vmatpush.msra.mxu0 %v957
    %1117 = vmatpush.msra.mxu0 %v953
    %1118 = vmatpush.msra.mxu0 %v949
    %1119 = vmatpush.msra.mxu0 %v945
    %1120 = vmatpush.msra.mxu0 %v941
    %1121 = vmatpush.msra.mxu0 %v937
    %1122 = vmatpush.msra.mxu0 %v933
    %1123 = vmatpush.msra.mxu0 %v929
    %1124 = vmatpush.msra.mxu0 %v925
    %1125 = vmatpush.msra.mxu0 %v921
    %1126 = vmatpush.msra.mxu0 %v917
    %1127 = vmatpush.msra.mxu0 %v913
    %1128 = vmatpush.msra.mxu0 %v909
    %1129 = vmatpush.msra.mxu0 %v905
    %1130 = vmatmul.f32.gmra.mxu0 %v1007
    %v1131 = vpop.f32.mrf.mxu0
    %v1132 = vadd.f32 %v1112, %v1131
    %1133 = vdwg.mxu0
    %1134 = vmatpush.msra.mxu0 %v646
    %1135 = vmatpush.msra.mxu0 %v642
    %1136 = vmatpush.msra.mxu0 %v638
    %1137 = vmatpush.msra.mxu0 %v634
    %1138 = vmatpush.msra.mxu0 %v630
    %1139 = vmatpush.msra.mxu0 %v626
    %1140 = vmatpush.msra.mxu0 %v622
    %1141 = vmatpush.msra.mxu0 %v618
    %1142 = vmatpush.msra.mxu0 %v614
    %1143 = vmatpush.msra.mxu0 %v610
    %1144 = vmatpush.msra.mxu0 %v606
    %1145 = vmatpush.msra.mxu0 %v602
    %1146 = vmatpush.msra.mxu0 %v598
    %1147 = vmatpush.msra.mxu0 %v594
    %1148 = vmatpush.msra.mxu0 %v590
    %1149 = vmatpush.msra.mxu0 %v586
    %1150 = vmatmul.f32.gmra.mxu0 %v1002
    %v1151 = vpop.f32.mrf.mxu0
    %v1152 = vadd.f32 %v972, %v1151
    %1153 = vdwg.mxu0
    %1154 = vmatpush.msra.mxu0 %v710
    %1155 = vmatpush.msra.mxu0 %v706
    %1156 = vmatpush.msra.mxu0 %v702
    %1157 = vmatpush.msra.mxu0 %v698
    %1158 = vmatpush.msra.mxu0 %v694
    %1159 = vmatpush.msra.mxu0 %v690
    %1160 = vmatpush.msra.mxu0 %v686
    %1161 = vmatpush.msra.mxu0 %v682
    %1162 = vmatpush.msra.mxu0 %v678
    %1163 = vmatpush.msra.mxu0 %v674
    %1164 = vmatpush.msra.mxu0 %v670
    %1165 = vmatpush.msra.mxu0 %v666
    %1166 = vmatpush.msra.mxu0 %v662
    %1167 = vmatpush.msra.mxu0 %v658
    %1168 = vmatpush.msra.mxu0 %v654
    %1169 = vmatpush.msra.mxu0 %v650
    %1170 = vmatmul.f32.gmra.mxu0 %v1003
    %v1171 = vpop.f32.mrf.mxu0
    %v1172 = vadd.f32 %v1152, %v1171
    %1173 = vdwg.mxu0
    %1174 = vmatpush.msra.mxu0 %v774
    %1175 = vmatpush.msra.mxu0 %v770
    %1176 = vmatpush.msra.mxu0 %v766
    %1177 = vmatpush.msra.mxu0 %v762
    %1178 = vmatpush.msra.mxu0 %v758
    %1179 = vmatpush.msra.mxu0 %v754
    %1180 = vmatpush.msra.mxu0 %v750
    %1181 = vmatpush.msra.mxu0 %v746
    %1182 = vmatpush.msra.mxu0 %v742
    %1183 = vmatpush.msra.mxu0 %v738
    %1184 = vmatpush.msra.mxu0 %v734
    %1185 = vmatpush.msra.mxu0 %v730
    %1186 = vmatpush.msra.mxu0 %v726
    %1187 = vmatpush.msra.mxu0 %v722
    %1188 = vmatpush.msra.mxu0 %v718
    %1189 = vmatpush.msra.mxu0 %v714
    %1190 = vmatmul.f32.gmra.mxu0 %v1004
    %v1191 = vpop.f32.mrf.mxu0
    %v1192 = vadd.f32 %v1172, %v1191
    %1193 = vdwg.mxu0
    %1194 = vmatpush.msra.mxu0 %v838
    %1195 = vmatpush.msra.mxu0 %v834
    %1196 = vmatpush.msra.mxu0 %v830
    %1197 = vmatpush.msra.mxu0 %v826
    %1198 = vmatpush.msra.mxu0 %v822
    %1199 = vmatpush.msra.mxu0 %v818
    %1200 = vmatpush.msra.mxu0 %v814
    %1201 = vmatpush.msra.mxu0 %v810
    %1202 = vmatpush.msra.mxu0 %v806
    %1203 = vmatpush.msra.mxu0 %v802
    %1204 = vmatpush.msra.mxu0 %v798
    %1205 = vmatpush.msra.mxu0 %v794
    %1206 = vmatpush.msra.mxu0 %v790
    %1207 = vmatpush.msra.mxu0 %v786
    %1208 = vmatpush.msra.mxu0 %v782
    %1209 = vmatpush.msra.mxu0 %v778
    %1210 = vmatmul.f32.gmra.mxu0 %v1005
    %v1211 = vpop.f32.mrf.mxu0
    %v1212 = vadd.f32 %v1192, %v1211
    %1213 = vdwg.mxu0
    %1214 = vmatpush.msra.mxu0 %v902
    %1215 = vmatpush.msra.mxu0 %v898
    %1216 = vmatpush.msra.mxu0 %v894
    %1217 = vmatpush.msra.mxu0 %v890
    %1218 = vmatpush.msra.mxu0 %v886
    %1219 = vmatpush.msra.mxu0 %v882
    %1220 = vmatpush.msra.mxu0 %v878
    %1221 = vmatpush.msra.mxu0 %v874
    %1222 = vmatpush.msra.mxu0 %v870
    %1223 = vmatpush.msra.mxu0 %v866
    %1224 = vmatpush.msra.mxu0 %v862
    %1225 = vmatpush.msra.mxu0 %v858
    %1226 = vmatpush.msra.mxu0 %v854
    %1227 = vmatpush.msra.mxu0 %v850
    %1228 = vmatpush.msra.mxu0 %v846
    %1229 = vmatpush.msra.mxu0 %v842
    %1230 = vmatmul.f32.gmra.mxu0 %v1006
    %v1231 = vpop.f32.mrf.mxu0
    %v1232 = vadd.f32 %v1212, %v1231
    %1233 = vdwg.mxu0
    %1234 = vmatpush.msra.mxu0 %v966
    %1235 = vmatpush.msra.mxu0 %v962
    %1236 = vmatpush.msra.mxu0 %v958
    %1237 = vmatpush.msra.mxu0 %v954
    %1238 = vmatpush.msra.mxu0 %v950
    %1239 = vmatpush.msra.mxu0 %v946
    %1240 = vmatpush.msra.mxu0 %v942
    %1241 = vmatpush.msra.mxu0 %v938
    %1242 = vmatpush.msra.mxu0 %v934
    %1243 = vmatpush.msra.mxu0 %v930
    %1244 = vmatpush.msra.mxu0 %v926
    %1245 = vmatpush.msra.mxu0 %v922
    %1246 = vmatpush.msra.mxu0 %v918
    %1247 = vmatpush.msra.mxu0 %v914
    %1248 = vmatpush.msra.mxu0 %v910
    %1249 = vmatpush.msra.mxu0 %v906
    %1250 = vmatmul.f32.gmra.mxu0 %v1007
    %v1251 = vpop.f32.mrf.mxu0
    %v1252 = vadd.f32 %v1232, %v1251
    %1253 = vdwg.mxu0
    %1254 = vmatpush.msra.mxu0 %v647
    %1255 = vmatpush.msra.mxu0 %v643
    %1256 = vmatpush.msra.mxu0 %v639
    %1257 = vmatpush.msra.mxu0 %v635
    %1258 = vmatpush.msra.mxu0 %v631
    %1259 = vmatpush.msra.mxu0 %v627
    %1260 = vmatpush.msra.mxu0 %v623
    %1261 = vmatpush.msra.mxu0 %v619
    %1262 = vmatpush.msra.mxu0 %v615
    %1263 = vmatpush.msra.mxu0 %v611
    %1264 = vmatpush.msra.mxu0 %v607
    %1265 = vmatpush.msra.mxu0 %v603
    %1266 = vmatpush.msra.mxu0 %v599
    %1267 = vmatpush.msra.mxu0 %v595
    %1268 = vmatpush.msra.mxu0 %v591
    %1269 = vmatpush.msra.mxu0 %v587
    %1270 = vmatmul.f32.gmra.mxu0 %v1002
    %v1271 = vpop.f32.mrf.mxu0
    %v1272 = vadd.f32 %v973, %v1271
    %1273 = vdwg.mxu0
    %1274 = vmatpush.msra.mxu0 %v711
    %1275 = vmatpush.msra.mxu0 %v707
    %1276 = vmatpush.msra.mxu0 %v703
    %1277 = vmatpush.msra.mxu0 %v699
    %1278 = vmatpush.msra.mxu0 %v695
    %1279 = vmatpush.msra.mxu0 %v691
    %1280 = vmatpush.msra.mxu0 %v687
    %1281 = vmatpush.msra.mxu0 %v683
    %1282 = vmatpush.msra.mxu0 %v679
    %1283 = vmatpush.msra.mxu0 %v675
    %1284 = vmatpush.msra.mxu0 %v671
    %1285 = vmatpush.msra.mxu0 %v667
    %1286 = vmatpush.msra.mxu0 %v663
    %1287 = vmatpush.msra.mxu0 %v659
    %1288 = vmatpush.msra.mxu0 %v655
    %1289 = vmatpush.msra.mxu0 %v651
    %1290 = vmatmul.f32.gmra.mxu0 %v1003
    %v1291 = vpop.f32.mrf.mxu0
    %v1292 = vadd.f32 %v1272, %v1291
    %1293 = vdwg.mxu0
    %1294 = vmatpush.msra.mxu0 %v775
    %1295 = vmatpush.msra.mxu0 %v771
    %1296 = vmatpush.msra.mxu0 %v767
    %1297 = vmatpush.msra.mxu0 %v763
    %1298 = vmatpush.msra.mxu0 %v759
    %1299 = vmatpush.msra.mxu0 %v755
    %1300 = vmatpush.msra.mxu0 %v751
    %1301 = vmatpush.msra.mxu0 %v747
    %1302 = vmatpush.msra.mxu0 %v743
    %1303 = vmatpush.msra.mxu0 %v739
    %1304 = vmatpush.msra.mxu0 %v735
    %1305 = vmatpush.msra.mxu0 %v731
    %1306 = vmatpush.msra.mxu0 %v727
    %1307 = vmatpush.msra.mxu0 %v723
    %1308 = vmatpush.msra.mxu0 %v719
    %1309 = vmatpush.msra.mxu0 %v715
    %1310 = vmatmul.f32.gmra.mxu0 %v1004
    %v1311 = vpop.f32.mrf.mxu0
    %v1312 = vadd.f32 %v1292, %v1311
    %1313 = vdwg.mxu0
    %1314 = vmatpush.msra.mxu0 %v839
    %1315 = vmatpush.msra.mxu0 %v835
    %1316 = vmatpush.msra.mxu0 %v831
    %1317 = vmatpush.msra.mxu0 %v827
    %1318 = vmatpush.msra.mxu0 %v823
    %1319 = vmatpush.msra.mxu0 %v819
    %1320 = vmatpush.msra.mxu0 %v815
    %1321 = vmatpush.msra.mxu0 %v811
    %1322 = vmatpush.msra.mxu0 %v807
    %1323 = vmatpush.msra.mxu0 %v803
    %1324 = vmatpush.msra.mxu0 %v799
    %1325 = vmatpush.msra.mxu0 %v795
    %1326 = vmatpush.msra.mxu0 %v791
    %1327 = vmatpush.msra.mxu0 %v787
    %1328 = vmatpush.msra.mxu0 %v783
    %1329 = vmatpush.msra.mxu0 %v779
    %1330 = vmatmul.f32.gmra.mxu0 %v1005
    %v1331 = vpop.f32.mrf.mxu0
    %v1332 = vadd.f32 %v1312, %v1331
    %1333 = vdwg.mxu0
    %1334 = vmatpush.msra.mxu0 %v903
    %1335 = vmatpush.msra.mxu0 %v899
    %1336 = vmatpush.msra.mxu0 %v895
    %1337 = vmatpush.msra.mxu0 %v891
    %1338 = vmatpush.msra.mxu0 %v887
    %1339 = vmatpush.msra.mxu0 %v883
    %1340 = vmatpush.msra.mxu0 %v879
    %1341 = vmatpush.msra.mxu0 %v875
    %1342 = vmatpush.msra.mxu0 %v871
    %1343 = vmatpush.msra.mxu0 %v867
    %1344 = vmatpush.msra.mxu0 %v863
    %1345 = vmatpush.msra.mxu0 %v859
    %1346 = vmatpush.msra.mxu0 %v855
    %1347 = vmatpush.msra.mxu0 %v851
    %1348 = vmatpush.msra.mxu0 %v847
    %1349 = vmatpush.msra.mxu0 %v843
    %1350 = vmatmul.f32.gmra.mxu0 %v1006
    %v1351 = vpop.f32.mrf.mxu0
    %v1352 = vadd.f32 %v1332, %v1351
    %1353 = vdwg.mxu0
    %1354 = vmatpush.msra.mxu0 %v967
    %1355 = vmatpush.msra.mxu0 %v963
    %1356 = vmatpush.msra.mxu0 %v959
    %1357 = vmatpush.msra.mxu0 %v955
    %1358 = vmatpush.msra.mxu0 %v951
    %1359 = vmatpush.msra.mxu0 %v947
    %1360 = vmatpush.msra.mxu0 %v943
    %1361 = vmatpush.msra.mxu0 %v939
    %1362 = vmatpush.msra.mxu0 %v935
    %1363 = vmatpush.msra.mxu0 %v931
    %1364 = vmatpush.msra.mxu0 %v927
    %1365 = vmatpush.msra.mxu0 %v923
    %1366 = vmatpush.msra.mxu0 %v919
    %1367 = vmatpush.msra.mxu0 %v915
    %1368 = vmatpush.msra.mxu0 %v911
    %1369 = vmatpush.msra.mxu0 %v907
    %1370 = vmatmul.f32.gmra.mxu0 %v1007
    %v1371 = vpop.f32.mrf.mxu0
    %v1372 = vadd.f32 %v1352, %v1371
    %1373 = vdwg.mxu0
    %1374 = vmatpush.msra.mxu0 %v648
    %1375 = vmatpush.msra.mxu0 %v644
    %1376 = vmatpush.msra.mxu0 %v640
    %1377 = vmatpush.msra.mxu0 %v636
    %1378 = vmatpush.msra.mxu0 %v632
    %1379 = vmatpush.msra.mxu0 %v628
    %1380 = vmatpush.msra.mxu0 %v624
    %1381 = vmatpush.msra.mxu0 %v620
    %1382 = vmatpush.msra.mxu0 %v616
    %1383 = vmatpush.msra.mxu0 %v612
    %1384 = vmatpush.msra.mxu0 %v608
    %1385 = vmatpush.msra.mxu0 %v604
    %1386 = vmatpush.msra.mxu0 %v600
    %1387 = vmatpush.msra.mxu0 %v596
    %1388 = vmatpush.msra.mxu0 %v592
    %1389 = vmatpush.msra.mxu0 %v588
    %1390 = vmatmul.f32.gmra.mxu0 %v1002
    %v1391 = vpop.f32.mrf.mxu0
    %v1392 = vadd.f32 %v974, %v1391
    %1393 = vdwg.mxu0
    %1394 = vmatpush.msra.mxu0 %v712
    %1395 = vmatpush.msra.mxu0 %v708
    %1396 = vmatpush.msra.mxu0 %v704
    %1397 = vmatpush.msra.mxu0 %v700
    %1398 = vmatpush.msra.mxu0 %v696
    %1399 = vmatpush.msra.mxu0 %v692
    %1400 = vmatpush.msra.mxu0 %v688
    %1401 = vmatpush.msra.mxu0 %v684
    %1402 = vmatpush.msra.mxu0 %v680
    %1403 = vmatpush.msra.mxu0 %v676
    %1404 = vmatpush.msra.mxu0 %v672
    %1405 = vmatpush.msra.mxu0 %v668
    %1406 = vmatpush.msra.mxu0 %v664
    %1407 = vmatpush.msra.mxu0 %v660
    %1408 = vmatpush.msra.mxu0 %v656
    %1409 = vmatpush.msra.mxu0 %v652
    %1410 = vmatmul.f32.gmra.mxu0 %v1003
    %v1411 = vpop.f32.mrf.mxu0
    %v1412 = vadd.f32 %v1392, %v1411
    %1413 = vdwg.mxu0
    %1414 = vmatpush.msra.mxu0 %v776
    %1415 = vmatpush.msra.mxu0 %v772
    %1416 = vmatpush.msra.mxu0 %v768
    %1417 = vmatpush.msra.mxu0 %v764
    %1418 = vmatpush.msra.mxu0 %v760
    %1419 = vmatpush.msra.mxu0 %v756
    %1420 = vmatpush.msra.mxu0 %v752
    %1421 = vmatpush.msra.mxu0 %v748
    %1422 = vmatpush.msra.mxu0 %v744
    %1423 = vmatpush.msra.mxu0 %v740
    %1424 = vmatpush.msra.mxu0 %v736
    %1425 = vmatpush.msra.mxu0 %v732
    %1426 = vmatpush.msra.mxu0 %v728
    %1427 = vmatpush.msra.mxu0 %v724
    %1428 = vmatpush.msra.mxu0 %v720
    %1429 = vmatpush.msra.mxu0 %v716
    %1430 = vmatmul.f32.gmra.mxu0 %v1004
    %v1431 = vpop.f32.mrf.mxu0
    %v1432 = vadd.f32 %v1412, %v1431
    %1433 = vdwg.mxu0
    %1434 = vmatpush.msra.mxu0 %v840
    %1435 = vmatpush.msra.mxu0 %v836
    %1436 = vmatpush.msra.mxu0 %v832
    %1437 = vmatpush.msra.mxu0 %v828
    %1438 = vmatpush.msra.mxu0 %v824
    %1439 = vmatpush.msra.mxu0 %v820
    %1440 = vmatpush.msra.mxu0 %v816
    %1441 = vmatpush.msra.mxu0 %v812
    %1442 = vmatpush.msra.mxu0 %v808
    %1443 = vmatpush.msra.mxu0 %v804
    %1444 = vmatpush.msra.mxu0 %v800
    %1445 = vmatpush.msra.mxu0 %v796
    %1446 = vmatpush.msra.mxu0 %v792
    %1447 = vmatpush.msra.mxu0 %v788
    %1448 = vmatpush.msra.mxu0 %v784
    %1449 = vmatpush.msra.mxu0 %v780
    %1450 = vmatmul.f32.gmra.mxu0 %v1005
    %v1451 = vpop.f32.mrf.mxu0
    %v1452 = vadd.f32 %v1432, %v1451
    %1453 = vdwg.mxu0
    %1454 = vmatpush.msra.mxu0 %v904
    %1455 = vmatpush.msra.mxu0 %v900
    %1456 = vmatpush.msra.mxu0 %v896
    %1457 = vmatpush.msra.mxu0 %v892
    %1458 = vmatpush.msra.mxu0 %v888
    %1459 = vmatpush.msra.mxu0 %v884
    %1460 = vmatpush.msra.mxu0 %v880
    %1461 = vmatpush.msra.mxu0 %v876
    %1462 = vmatpush.msra.mxu0 %v872
    %1463 = vmatpush.msra.mxu0 %v868
    %1464 = vmatpush.msra.mxu0 %v864
    %1465 = vmatpush.msra.mxu0 %v860
    %1466 = vmatpush.msra.mxu0 %v856
    %1467 = vmatpush.msra.mxu0 %v852
    %1468 = vmatpush.msra.mxu0 %v848
    %1469 = vmatpush.msra.mxu0 %v844
    %1470 = vmatmul.f32.gmra.mxu0 %v1006
    %v1471 = vpop.f32.mrf.mxu0
    %v1472 = vadd.f32 %v1452, %v1471
    %1473 = vdwg.mxu0
    %1474 = vmatpush.msra.mxu0 %v968
    %1475 = vmatpush.msra.mxu0 %v964
    %1476 = vmatpush.msra.mxu0 %v960
    %1477 = vmatpush.msra.mxu0 %v956
    %1478 = vmatpush.msra.mxu0 %v952
    %1479 = vmatpush.msra.mxu0 %v948
    %1480 = vmatpush.msra.mxu0 %v944
    %1481 = vmatpush.msra.mxu0 %v940
    %1482 = vmatpush.msra.mxu0 %v936
    %1483 = vmatpush.msra.mxu0 %v932
    %1484 = vmatpush.msra.mxu0 %v928
    %1485 = vmatpush.msra.mxu0 %v924
    %1486 = vmatpush.msra.mxu0 %v920
    %1487 = vmatpush.msra.mxu0 %v916
    %1488 = vmatpush.msra.mxu0 %v912
    %1489 = vmatpush.msra.mxu0 %v908
    %1490 = vmatmul.f32.gmra.mxu0 %v1007
    %v1491 = vpop.f32.mrf.mxu0
    %v1492 = vadd.f32 %v1472, %v1491
    %1493 = vdwg.mxu0
    %v1498 = vrot.slane %v463, 6
    %v1499 = vrot.slane %v523, 4
    %v1500 = vrot.slane %v583, 2
    %vm1501 = vcmask 1041408
    %v1502 = vsel %vm1501, %v403, %v1498
    %vm1503 = vcmask 1045508
    %v1504 = vsel %vm1503, %v1499, %v1500
    %vm1505 = vcmask 1043456
    %v1506 = vsel %vm1505, %v1502, %v1504
    %vm1507 = vcmask 1043458
    %v1508 = vsel %vm1507, %v403, %v1498
    %vm1509 = vcmask 1045504
    %v1510 = vsel %vm1509, %v1500, %v1499
    %vm1511 = vcmask 1045506
    %v1512 = vsel %vm1511, %v1508, %v1510
    %v1513 = vrot.slane %v1512, 2
    %v1514 = vsel %vm1503, %v403, %v1498
    %v1515 = vsel %vm1501, %v1499, %v1500
    %v1516 = vsel %vm1505, %v1515, %v1514
    %v1517 = vrot.slane %v1516, 4
    %v1518 = vsel %vm1509, %v1498, %v403
    %v1519 = vsel %vm1507, %v1499, %v1500
    %v1520 = vsel %vm1511, %v1519, %v1518
    %v1521 = vrot.slane %v1520, 6
    %1526 = vst [vmem:[#allocation13] sm:$0xff] %v1506
    %1527 = vst [vmem:[#allocation13 + $0x10] sm:$0xff] %v1513
    %1528 = vst [vmem:[#allocation13 + $0x20] sm:$0xff] %v1517
    %1529 = vst [vmem:[#allocation13 + $0x30] sm:$0xff] %v1521
    %v1534 = vrot.slane %v1252, 6
    %v1535 = vrot.slane %v1372, 4
    %v1536 = vrot.slane %v1492, 2
    %v1537 = vsel %vm1501, %v1132, %v1534
    %v1538 = vsel %vm1503, %v1535, %v1536
    %v1539 = vsel %vm1505, %v1537, %v1538
    %v1540 = vsel %vm1507, %v1132, %v1534
    %v1541 = vsel %vm1509, %v1536, %v1535
    %v1542 = vsel %vm1511, %v1540, %v1541
    %v1543 = vrot.slane %v1542, 2
    %v1544 = vsel %vm1503, %v1132, %v1534
    %v1545 = vsel %vm1501, %v1535, %v1536
    %v1546 = vsel %vm1505, %v1545, %v1544
    %v1547 = vrot.slane %v1546, 4
    %v1548 = vsel %vm1509, %v1534, %v1132
    %v1549 = vsel %vm1507, %v1535, %v1536
    %v1550 = vsel %vm1511, %v1549, %v1548
    %v1551 = vrot.slane %v1550, 6
    %1556 = vst [vmem:[#allocation13 + $0x8] sm:$0xff] %v1539
    %1557 = vst [vmem:[#allocation13 + $0x18] sm:$0xff] %v1543
    %1558 = vst [vmem:[#allocation13 + $0x28] sm:$0xff] %v1547
    %1559 = vst [vmem:[#allocation13 + $0x38] sm:$0xff] %v1551
    // Predicated region
    $region50: #{tpu_custom_call.1} parent=1 // pred_check
      _
    $region51: #{tpu_custom_call.1} parent=1 // pred_check_branch
      %1561 = sbr.rel (0) target = $region53
    $region52: #{tpu_custom_call.1} parent=1 // pred_region
      %1563 = vsyncadd [#allocation4], 768
      %s1564 = sshll.u32 [#allocation13], 4
      %s1565 = int_to_ptr.vmem [resolvable:$true] %s1564
      %s1566 = sshll.u32 %s6, 4
      %s1567 = int_to_ptr.hbm [resolvable:$true] %s1566
      %1572 = dma.vmem_to_hbm [thread:$0]  %s1565, 256, %s1567, [#allocation4], 256, 256, 16
    $region53: #{tpu_custom_call.1} parent=1 // pred_fallthru
      _
    // Predicated region
    $region54: #{tpu_custom_call.1} parent=1 // pred_check
      _
    $region55: #{tpu_custom_call.1} parent=1 // pred_check_branch
      %1574 = sbr.rel (0) target = $region57
    $region56: #{tpu_custom_call.1} parent=1 // pred_region
      %1576 = dma.done [#allocation4], 1024
    $region57: #{tpu_custom_call.1} parent=1 // pred_fallthru
      _
    %1577 = vsyncpa [#allocation3], 1
    %1578 = vsyncpa [#allocation6], 1
    %1579 = vsyncpa [#allocation9], 1
    %1580 = vsyncpa [#allocation12], 1
    %1581 = vsyncpa [#allocation4], 1

</llo_original>
